<compile_context>
chip_gen: v7x
topology: tpu7x:2x2x1
jax: 0.10.0
libtpu: 0.0.40
codegen_flags: <defaults>
</compile_context>

<pallas_src>
import jax
import jax.numpy as jnp
import numpy as np
from jax.experimental import pallas as pl

N_CHARS = 4
LATENT = 32
SEQ_LEN = 8
HIDDEN = 32
BATCH = 2
KTAPS = 5                       # Conv1d kernel size
PAD = 2                         # Conv1d padding
SH = SEQ_LEN * HIDDEN           # 256: lane-dense activation width, (t, c)-ordered
C_PAD = 128                     # head channels padded to one full lane tile
HEAD_W = SEQ_LEN * C_PAD        # 1024: lane-dense head-output width

# Row offsets inside the packed "narrow" slab (lane width = SH = 256).
ROW_WFC = 0                         # (LATENT, SH)  fc1 weight, columns in (t, c) order
ROW_WBAND = LATENT                  # 4 x (SH, SH)  banded conv weights (padding baked in)
ROW_BFC = ROW_WBAND + 4 * SH        # (1, SH)       fc1 bias, (t, c)-ordered
ROW_BCONV = ROW_BFC + 1             # 4 x (1, SH)   conv biases, tiled over time
W256_ROWS = ROW_BCONV + 4           # 1061

# Row offsets inside the packed "wide" slab (lane width = HEAD_W = 1024).
ROW_WHEAD = 0                       # (SH, HEAD_W)  block-diagonal 1x1-conv head weight
ROW_BHEAD = SH                      # (1, HEAD_W)   head bias, tiled over time
W1024_ROWS = SH + 1                 # 257


# ------------------------------------------------------------------ the single fused kernel
def gen_kernel(z_ref, w256_ref, w1024_ref, out_ref):
    # fc1: (B, L) @ (L, S*H) + bias; output lanes already in (t, c) order.
    x = jnp.dot(z_ref[...], w256_ref[ROW_WFC:ROW_WFC + LATENT, :],
                preferred_element_type=jnp.float32)
    x = x + w256_ref[ROW_BFC:ROW_BFC + 1, :]

    def conv5(y, idx):
        # Conv1d(k=5, pad=2) == one banded (S*H, S*H) matmul on the lane-dense activation.
        w = w256_ref[ROW_WBAND + idx * SH:ROW_WBAND + (idx + 1) * SH, :]
        b = w256_ref[ROW_BCONV + idx:ROW_BCONV + idx + 1, :]
        return jnp.dot(y, w, preferred_element_type=jnp.float32) + b

    def resblock(x, i):
        y = conv5(jnp.maximum(x, 0.0), 2 * i)
        y = conv5(jnp.maximum(y, 0.0), 2 * i + 1)
        return x + 0.3 * y

    x = resblock(x, 0)
    x = resblock(x, 1)

    # 1x1 conv head as a block-diagonal matmul -> dense (B, S*C_PAD) store.
    out = jnp.dot(x, w1024_ref[ROW_WHEAD:ROW_WHEAD + SH, :],
                  preferred_element_type=jnp.float32)
    out_ref[...] = out + w1024_ref[ROW_BHEAD:ROW_BHEAD + 1, :]


# ------------------------------------------------------------------ wrapper
def netg_cnn_forward(noise, packed):
    B = noise.shape[0]
    w256, w1024 = packed["w256"], packed["w1024"]

    flops = (2 * B * LATENT * SH            # fc1
             + 4 * 2 * B * SH * SH          # 4 banded convs
             + 2 * B * SH * HEAD_W)         # head
    bytes_accessed = 4 * (int(noise.size) + int(w256.size) + int(w1024.size) + B * HEAD_W)

    out = pl.pallas_call(
        gen_kernel,
        out_shape=jax.ShapeDtypeStruct((B, HEAD_W), jnp.float32),
        cost_estimate=pl.CostEstimate(flops=int(flops), transcendentals=0,
                                      bytes_accessed=int(bytes_accessed)),
    )(noise, w256, w1024)
    # Free host-side relayout back to torch semantics: (B, seq_len, n_chars).
    return out.reshape(B, SEQ_LEN, C_PAD)[:, :, :N_CHARS]


# ------------------------------------------------------------------ parameters (torch layout)
def init_params(key):
    ks = jax.random.split(key, 12)

    def nrm(k, shape, scale=0.1):
        return (scale * jax.random.normal(k, shape)).astype(jnp.float32)

    p = {}
    p["fc_w"] = nrm(ks[0], (HIDDEN * SEQ_LEN, LATENT))   # nn.Linear weight (out, in)
    p["fc_b"] = nrm(ks[1], (HIDDEN * SEQ_LEN,))
    p["r1c1_w"] = nrm(ks[2], (HIDDEN, HIDDEN, 5)); p["r1c1_b"] = nrm(ks[3], (HIDDEN,))
    p["r1c2_w"] = nrm(ks[4], (HIDDEN, HIDDEN, 5)); p["r1c2_b"] = nrm(ks[5], (HIDDEN,))
    p["r2c1_w"] = nrm(ks[6], (HIDDEN, HIDDEN, 5)); p["r2c1_b"] = nrm(ks[7], (HIDDEN,))
    p["r2c2_w"] = nrm(ks[8], (HIDDEN, HIDDEN, 5)); p["r2c2_b"] = nrm(ks[9], (HIDDEN,))
    p["c1_w"] = nrm(ks[10], (N_CHARS, HIDDEN, 1)); p["c1_b"] = nrm(ks[11], (N_CHARS,))
    return p


def pack_params(p):
    """One-time host-side re-layout: bake conv padding into banded matrices, pack all weights
    and biases into two lane-dense slabs (3 kernel inputs total, incl. noise)."""
    w256 = np.zeros((W256_ROWS, SH), np.float32)

    # fc1: output lane j = t*H + c must hold torch flat index c*S + t.
    perm = np.arange(SH).reshape(HIDDEN, SEQ_LEN).T.reshape(-1)       # perm[t*H+c] = c*S+t
    fcw = np.asarray(p["fc_w"])                                        # (H*S, L)
    w256[ROW_WFC:ROW_WFC + LATENT, :] = fcw[perm, :].T                 # (L, S*H)
    w256[ROW_BFC, :] = np.asarray(p["fc_b"])[perm]

    def band(w):
        """torch (Cout, Cin, 5) -> (S*H, S*H) banded matrix; zero padding baked in by simply
        omitting out-of-range halo rows."""
        wn = np.asarray(w)
        Wb = np.zeros((SH, SH), np.float32)
        for t_out in range(SEQ_LEN):
            for k in range(KTAPS):
                t_in = t_out + k - PAD
                if 0 <= t_in < SEQ_LEN:
                    Wb[t_in * HIDDEN:(t_in + 1) * HIDDEN,
                       t_out * HIDDEN:(t_out + 1) * HIDDEN] = wn[:, :, k].T
        return Wb

    for i, name in enumerate(["r1c1", "r1c2", "r2c1", "r2c2"]):
        w256[ROW_WBAND + i * SH:ROW_WBAND + (i + 1) * SH, :] = band(p[name + "_w"])
        w256[ROW_BCONV + i, :] = np.tile(np.asarray(p[name + "_b"]), SEQ_LEN)

    # Head: block-diagonal (S*H, S*C_PAD) with identical (H, n_chars) blocks, lane-padded.
    w1024 = np.zeros((W1024_ROWS, HEAD_W), np.float32)
    wc = np.asarray(p["c1_w"])[:, :, 0].T                              # (H, n_chars)
    bc = np.asarray(p["c1_b"])
    for t in range(SEQ_LEN):
        w1024[ROW_WHEAD + t * HIDDEN:ROW_WHEAD + (t + 1) * HIDDEN,
              t * C_PAD:t * C_PAD + N_CHARS] = wc
        w1024[ROW_BHEAD, t * C_PAD:t * C_PAD + N_CHARS] = bc

    return {"w256": jnp.asarray(w256), "w1024": jnp.asarray(w1024)}


# ------------------------------------------------------------------ plain-JAX reference (torch semantics)
def reference_forward(noise, p):
    B = noise.shape[0]
    h = noise @ p["fc_w"].T + p["fc_b"]
    x = h.reshape(B, HIDDEN, SEQ_LEN)

    def conv5(x, w, b):
        T = x.shape[2]
        xp = jnp.pad(x, ((0, 0), (0, 0), (2, 2)))
        out = jnp.broadcast_to(b[None, :, None], (x.shape[0], w.shape[0], T)).astype(jnp.float32)
        for k in range(5):
            out = out + jnp.einsum("oi,bit->bot", w[:, :, k], xp[:, :, k:k + T])
        return out

    def resblock(x, w1, b1, w2, b2):
        y = jnp.maximum(x, 0.0)
        y = conv5(y, w1, b1)
        y = jnp.maximum(y, 0.0)
        y = conv5(y, w2, b2)
        return x + 0.3 * y

    x = resblock(x, p["r1c1_w"], p["r1c1_b"], p["r1c2_w"], p["r1c2_b"])
    x = resblock(x, p["r2c1_w"], p["r2c1_b"], p["r2c2_w"], p["r2c2_b"])
    out = jnp.einsum("oi,bit->bot", p["c1_w"][:, :, 0], x) + p["c1_b"][None, :, None]
    return out.transpose(0, 2, 1)


if __name__ == "__main__":
    key = jax.random.PRNGKey(0)
    pkey, nkey = jax.random.split(key)
    params = init_params(pkey)
    noise = jax.random.normal(nkey, (BATCH, LATENT), dtype=jnp.float32)

    packed = pack_params(params)              # one-time parameter re-layout (host side)
    fwd = jax.jit(netg_cnn_forward)
    out = jax.block_until_ready(fwd(noise, packed))

    assert out.shape == (BATCH, SEQ_LEN, N_CHARS), out.shape
    ref = reference_forward(noise, params)
    err = float(jnp.max(jnp.abs(out - ref)))
    if err > 1e-4:
        raise AssertionError(f"kernel/reference mismatch, max abs err = {err}")
    print("KERNEL_OK")
</pallas_src>

<mosaic_0001>
module attributes {stable_mosaic.version = 11 : i64} {
  func.func @gen_kernel(%arg0: memref<2x32xf32, #tpu.memory_space<vmem>>, %arg1: memref<1061x256xf32, #tpu.memory_space<vmem>>, %arg2: memref<257x1024xf32, #tpu.memory_space<vmem>>, %arg3: memref<2x1024xf32, #tpu.memory_space<vmem>>) attributes {dimension_semantics = [], scalar_prefetch = 0 : i64, scratch_operands = 0 : i64, tpu.core_type = #tpu.core_type<tc>} {
    %c0 = arith.constant 0 : index
    %c0_0 = arith.constant 0 : index
    %0 = vector.load %arg0[%c0, %c0_0] : memref<2x32xf32, #tpu.memory_space<vmem>>, vector<2x32xf32>
    %c0_1 = arith.constant 0 : index
    %c0_2 = arith.constant 0 : index
    %1 = vector.load %arg1[%c0_1, %c0_2] : memref<1061x256xf32, #tpu.memory_space<vmem>>, vector<32x256xf32>
    %cst = arith.constant dense<0.000000e+00> : vector<2x256xf32>
    %2 = tpu.matmul %0, %1, %cst {dimension_numbers = #tpu.dot_dimension_numbers<[1], [0], [0], [1], [0, 0, 1, 1], [], []>} : vector<2x32xf32>, vector<32x256xf32>, vector<2x256xf32> -> vector<2x256xf32>
    %c1056 = arith.constant 1056 : index
    %c0_3 = arith.constant 0 : index
    %3 = vector.load %arg1[%c1056, %c0_3] : memref<1061x256xf32, #tpu.memory_space<vmem>>, vector<1x256xf32>
    %4 = vector.broadcast %3 : vector<1x256xf32> to vector<2x256xf32>
    %5 = arith.addf %2, %4 : vector<2x256xf32>
    %cst_4 = arith.constant 0.000000e+00 : f32
    %6 = vector.broadcast %cst_4 : f32 to vector<2x256xf32>
    %7 = arith.maximumf %5, %6 : vector<2x256xf32>
    %c32 = arith.constant 32 : index
    %c0_5 = arith.constant 0 : index
    %8 = vector.load %arg1[%c32, %c0_5] : memref<1061x256xf32, #tpu.memory_space<vmem>>, vector<256x256xf32>
    %c1057 = arith.constant 1057 : index
    %c0_6 = arith.constant 0 : index
    %9 = vector.load %arg1[%c1057, %c0_6] : memref<1061x256xf32, #tpu.memory_space<vmem>>, vector<1x256xf32>
    %cst_7 = arith.constant dense<0.000000e+00> : vector<2x256xf32>
    %10 = tpu.matmul %7, %8, %cst_7 {dimension_numbers = #tpu.dot_dimension_numbers<[1], [0], [0], [1], [0, 0, 1, 1], [], []>} : vector<2x256xf32>, vector<256x256xf32>, vector<2x256xf32> -> vector<2x256xf32>
    %11 = vector.broadcast %9 : vector<1x256xf32> to vector<2x256xf32>
    %12 = arith.addf %10, %11 : vector<2x256xf32>
    %cst_8 = arith.constant 0.000000e+00 : f32
    %13 = vector.broadcast %cst_8 : f32 to vector<2x256xf32>
    %14 = arith.maximumf %12, %13 : vector<2x256xf32>
    %c288 = arith.constant 288 : index
    %c0_9 = arith.constant 0 : index
    %15 = vector.load %arg1[%c288, %c0_9] : memref<1061x256xf32, #tpu.memory_space<vmem>>, vector<256x256xf32>
    %c1058 = arith.constant 1058 : index
    %c0_10 = arith.constant 0 : index
    %16 = vector.load %arg1[%c1058, %c0_10] : memref<1061x256xf32, #tpu.memory_space<vmem>>, vector<1x256xf32>
    %cst_11 = arith.constant dense<0.000000e+00> : vector<2x256xf32>
    %17 = tpu.matmul %14, %15, %cst_11 {dimension_numbers = #tpu.dot_dimension_numbers<[1], [0], [0], [1], [0, 0, 1, 1], [], []>} : vector<2x256xf32>, vector<256x256xf32>, vector<2x256xf32> -> vector<2x256xf32>
    %18 = vector.broadcast %16 : vector<1x256xf32> to vector<2x256xf32>
    %19 = arith.addf %17, %18 : vector<2x256xf32>
    %cst_12 = arith.constant 3.000000e-01 : f32
    %20 = vector.broadcast %cst_12 : f32 to vector<2x256xf32>
    %21 = arith.mulf %20, %19 : vector<2x256xf32>
    %22 = arith.addf %5, %21 : vector<2x256xf32>
    %cst_13 = arith.constant 0.000000e+00 : f32
    %23 = vector.broadcast %cst_13 : f32 to vector<2x256xf32>
    %24 = arith.maximumf %22, %23 : vector<2x256xf32>
    %c544 = arith.constant 544 : index
    %c0_14 = arith.constant 0 : index
    %25 = vector.load %arg1[%c544, %c0_14] : memref<1061x256xf32, #tpu.memory_space<vmem>>, vector<256x256xf32>
    %c1059 = arith.constant 1059 : index
    %c0_15 = arith.constant 0 : index
    %26 = vector.load %arg1[%c1059, %c0_15] : memref<1061x256xf32, #tpu.memory_space<vmem>>, vector<1x256xf32>
    %cst_16 = arith.constant dense<0.000000e+00> : vector<2x256xf32>
    %27 = tpu.matmul %24, %25, %cst_16 {dimension_numbers = #tpu.dot_dimension_numbers<[1], [0], [0], [1], [0, 0, 1, 1], [], []>} : vector<2x256xf32>, vector<256x256xf32>, vector<2x256xf32> -> vector<2x256xf32>
    %28 = vector.broadcast %26 : vector<1x256xf32> to vector<2x256xf32>
    %29 = arith.addf %27, %28 : vector<2x256xf32>
    %cst_17 = arith.constant 0.000000e+00 : f32
    %30 = vector.broadcast %cst_17 : f32 to vector<2x256xf32>
    %31 = arith.maximumf %29, %30 : vector<2x256xf32>
    %c800 = arith.constant 800 : index
    %c0_18 = arith.constant 0 : index
    %32 = vector.load %arg1[%c800, %c0_18] : memref<1061x256xf32, #tpu.memory_space<vmem>>, vector<256x256xf32>
    %c1060 = arith.constant 1060 : index
    %c0_19 = arith.constant 0 : index
    %33 = vector.load %arg1[%c1060, %c0_19] : memref<1061x256xf32, #tpu.memory_space<vmem>>, vector<1x256xf32>
    %cst_20 = arith.constant dense<0.000000e+00> : vector<2x256xf32>
    %34 = tpu.matmul %31, %32, %cst_20 {dimension_numbers = #tpu.dot_dimension_numbers<[1], [0], [0], [1], [0, 0, 1, 1], [], []>} : vector<2x256xf32>, vector<256x256xf32>, vector<2x256xf32> -> vector<2x256xf32>
    %35 = vector.broadcast %33 : vector<1x256xf32> to vector<2x256xf32>
    %36 = arith.addf %34, %35 : vector<2x256xf32>
    %cst_21 = arith.constant 3.000000e-01 : f32
    %37 = vector.broadcast %cst_21 : f32 to vector<2x256xf32>
    %38 = arith.mulf %37, %36 : vector<2x256xf32>
    %39 = arith.addf %22, %38 : vector<2x256xf32>
    %c0_22 = arith.constant 0 : index
    %c0_23 = arith.constant 0 : index
    %40 = vector.load %arg2[%c0_22, %c0_23] : memref<257x1024xf32, #tpu.memory_space<vmem>>, vector<256x1024xf32>
    %cst_24 = arith.constant dense<0.000000e+00> : vector<2x1024xf32>
    %41 = tpu.matmul %39, %40, %cst_24 {dimension_numbers = #tpu.dot_dimension_numbers<[1], [0], [0], [1], [0, 0, 1, 1], [], []>} : vector<2x256xf32>, vector<256x1024xf32>, vector<2x1024xf32> -> vector<2x1024xf32>
    %c256 = arith.constant 256 : index
    %c0_25 = arith.constant 0 : index
    %42 = vector.load %arg2[%c256, %c0_25] : memref<257x1024xf32, #tpu.memory_space<vmem>>, vector<1x1024xf32>
    %43 = vector.broadcast %42 : vector<1x1024xf32> to vector<2x1024xf32>
    %44 = arith.addf %41, %43 : vector<2x1024xf32>
    %c0_26 = arith.constant 0 : index
    %c0_27 = arith.constant 0 : index
    %45 = vector.load %arg3[%c0_26, %c0_27] : memref<2x1024xf32, #tpu.memory_space<vmem>>, vector<2x1024xf32>
    tpu.vector_store %arg3[%c0_26, %c0_27], %44 {strides = array<i32>} : memref<2x1024xf32, #tpu.memory_space<vmem>>, vector<2x1024xf32>,
    return
  }
}

</mosaic_0001>

<llo_original>
// kernel: netg_cnn_forward.1
$region0: #{netg_cnn_forward.1}
  #allocation0 [shape = 'u32[]', space=smem, size = 0x4, offset = 0x4, fixed_abs, tag = 'smem constant byte address 0x4 - core index']
  #allocation1 [shape = 'u32[144,128]{1,0:T(1,128)}', space=vmem, size = 0x12000, scoped, tag = 'internal scratch']
  %s0 = inlined_call_operand.hbm [shape: f32[2,32], index: 0, kind: input, shape index: {}]
  %s1 = inlined_call_operand.hbm [shape: f32[1061,256], index: 1, kind: input, shape index: {}]
  %s2 = inlined_call_operand.hbm [shape: f32[257,1024], index: 2, kind: input, shape index: {}]
  %s3 = inlined_call_operand.vmem [shape: f32[2,1024], index: 3, kind: output, shape index: {}]
  %s4 = sld [smem:[#allocation0]]
  $region34: #{netg_cnn_forward.1} parent=0
    _
  %s6 = ssub.s32 1, %s4
  %s7 = scalar_select 0, %s6, %s4
  $region1: #{netg_cnn_forward.1} parent=0
    #allocation2 [shape = 'u8[1024]{0}', space=vmem, size = 0x400, scoped, tag = 'input window, operand 0, single buffered']
    #allocation3 [shape = 's32[1]{0}', space=sflag, size = 0x4, scoped, tag = 'scoped memory for netg_cnn_forward.1']
    #allocation4 [shape = 'u8[1089536]{0}', space=vmem, size = 0x10a000, scoped, tag = 'input window, operand 1, single buffered']
    #allocation5 [shape = 's32[1]{0}', space=sflag, size = 0x4, scoped, tag = 'scoped memory for netg_cnn_forward.1']
    #allocation6 [shape = 'u8[1081344]{0}', space=vmem, size = 0x108000, scoped, tag = 'input window, operand 2, single buffered']
    %8 = vsyncpa [#allocation3], 0
    %9 = vsyncpa [#allocation5], 0
    // Predicated region
    $region2: #{netg_cnn_forward.1} parent=1 // pred_check
      _
    $region3: #{netg_cnn_forward.1} parent=1 // pred_check_branch
      %11 = sbr.rel (0) target = $region5
    $region4: #{netg_cnn_forward.1} parent=1 // pred_region
      %s13 = ssub.s32 32, 32
      %14 = vsyncadd [#allocation3], %s13
      %s16 = sshll.u32 [#allocation2], 4
      %s17 = int_to_ptr.vmem [resolvable:$true] %s16
      %19 = dma.hbm_to_vmem [thread:$0]  %s0, 32, %s17, [#allocation3]
    $region5: #{netg_cnn_forward.1} parent=1 // pred_fallthru
      _
    // Predicated region
    $region6: #{netg_cnn_forward.1} parent=1 // pred_check
      _
    $region7: #{netg_cnn_forward.1} parent=1 // pred_check_branch
      %21 = sbr.rel (0) target = $region9
    $region8: #{netg_cnn_forward.1} parent=1 // pred_region
      %s23 = ssub.s32 34048, 34048
      %24 = vsyncadd [#allocation5], %s23
      %s25 = sshll.u32 [#allocation4], 4
      %s26 = int_to_ptr.vmem [resolvable:$true] %s25
      %31 = dma.hbm_to_vmem [thread:$0]  %s1, 34048, %s26, [#allocation5], 256, 256, 16
    $region9: #{netg_cnn_forward.1} parent=1 // pred_fallthru
      _
    // Predicated region
    $region10: #{netg_cnn_forward.1} parent=1 // pred_check
      _
    $region11: #{netg_cnn_forward.1} parent=1 // pred_check_branch
      %33 = sbr.rel (0) target = $region13
    $region12: #{netg_cnn_forward.1} parent=1 // pred_region
      %s35 = ssub.s32 33792, 33792
      %36 = vsyncadd [#allocation5], %s35
      %s37 = sshll.u32 [#allocation6], 4
      %s38 = int_to_ptr.vmem [resolvable:$true] %s37
      %43 = dma.hbm_to_vmem [thread:$0]  %s2, 33792, %s38, [#allocation5], 1024, 1024, 64
    $region13: #{netg_cnn_forward.1} parent=1 // pred_fallthru
      _
    // Predicated region
    $region14: #{netg_cnn_forward.1} parent=1 // pred_check
      _
    $region15: #{netg_cnn_forward.1} parent=1 // pred_check_branch
      %45 = sbr.rel (0) target = $region17
    $region16: #{netg_cnn_forward.1} parent=1 // pred_region
      %46 = dma.done [#allocation3], 32
    $region17: #{netg_cnn_forward.1} parent=1 // pred_fallthru
      _
    // Predicated region
    $region18: #{netg_cnn_forward.1} parent=1 // pred_check
      _
    $region19: #{netg_cnn_forward.1} parent=1 // pred_check_branch
      %48 = sbr.rel (0) target = $region21
    $region20: #{netg_cnn_forward.1} parent=1 // pred_region
      %49 = dma.done [#allocation5], 34048
    $region21: #{netg_cnn_forward.1} parent=1 // pred_fallthru
      _
    // Predicated region
    $region22: #{netg_cnn_forward.1} parent=1 // pred_check
      _
    $region23: #{netg_cnn_forward.1} parent=1 // pred_check_branch
      %51 = sbr.rel (0) target = $region25
    $region24: #{netg_cnn_forward.1} parent=1 // pred_region
      %52 = dma.done [#allocation5], 33792
    $region25: #{netg_cnn_forward.1} parent=1 // pred_fallthru
      _
    %v53 = vld [vmem:[#allocation2] sm:$0x3]
    %v54 = vld [vmem:[#allocation4] sm:$0xff]
    %v55 = vld [vmem:[#allocation4 + $0x8] sm:$0xff]
    %v56 = vld [vmem:[#allocation4 + $0x10] sm:$0xff]
    %v57 = vld [vmem:[#allocation4 + $0x18] sm:$0xff]
    %v58 = vld [vmem:[#allocation4 + $0x20] sm:$0xff]
    %v59 = vld [vmem:[#allocation4 + $0x28] sm:$0xff]
    %v60 = vld [vmem:[#allocation4 + $0x30] sm:$0xff]
    %v61 = vld [vmem:[#allocation4 + $0x38] sm:$0xff]
    %s62 = scalar_lea.vmem [#allocation4], 2112
    %v63 = vld [vmem:[%s62] ss:$8 sm:$0x3]
    %v65 = vlaneseq
    %v66 = vshrl.u32 %v65, 7
    %v67 = vsub.s32 0, %v66
    %v68 = vrot.slane %v63, %v67
    %v69 = vlaneseq
    %v70 = vshrl.u32 %v69, 7
    %v71 = vsub.s32 1, %v70
    %v72 = vrot.slane %v63, %v71
    %vm75 = vcmask 261120
    %v77 = vsel %vm75, %v53, 0
    %79 = vmatprep.subr.mxu0 %v55
    %80 = vmatpush1.msra.mxu0 %v54
    %81 = vmatprep.subr.mxu0 %v57
    %82 = vmatpush1.msra.mxu0 %v56
    %83 = vmatprep.subr.mxu0 %v59
    %84 = vmatpush1.msra.mxu0 %v58
    %85 = vmatprep.subr.mxu0 %v61
    %86 = vmatpush1.msra.mxu0 %v60
    %87 = vmatprep.subr.mxu0 0.0
    %88 = vmatpush1.msra.mxu0 0.0
    %89 = vmatprep.subr.mxu0 0.0
    %90 = vmatpush1.msra.mxu0 0.0
    %91 = vmatprep.subr.mxu0 0.0
    %92 = vmatpush1.msra.mxu0 0.0
    %93 = vmatprep.subr.mxu0 0.0
    %94 = vmatpush1.msra.mxu0 0.0
    %95 = vmatprep.subr.mxu0 0.0
    %96 = vmatpush1.msra.mxu0 0.0
    %97 = vmatprep.subr.mxu0 0.0
    %98 = vmatpush1.msra.mxu0 0.0
    %99 = vmatprep.subr.mxu0 0.0
    %100 = vmatpush1.msra.mxu0 0.0
    %101 = vmatprep.subr.mxu0 0.0
    %102 = vmatpush1.msra.mxu0 0.0
    %103 = vmatprep.subr.mxu0 0.0
    %104 = vmatpush1.msra.mxu0 0.0
    %105 = vmatprep.subr.mxu0 0.0
    %106 = vmatpush1.msra.mxu0 0.0
    %107 = vmatprep.subr.mxu0 0.0
    %108 = vmatpush1.msra.mxu0 0.0
    %109 = vmatprep.subr.mxu0 0.0
    %110 = vmatpush1.msra.mxu0 0.0
    %111 = vmatprep.subr.mxu0 0.0
    %112 = vmatpush1.msra.mxu0 0.0
    %113 = vmatprep.subr.mxu0 0.0
    %114 = vmatpush1.msra.mxu0 0.0
    %115 = vmatprep.subr.mxu0 0.0
    %116 = vmatpush1.msra.mxu0 0.0
    %117 = vmatprep.subr.mxu0 0.0
    %118 = vmatpush1.msra.mxu0 0.0
    %119 = vmatprep.subr.mxu0 0.0
    %120 = vmatpush1.msra.mxu0 0.0
    %121 = vmatprep.subr.mxu0 0.0
    %122 = vmatpush1.msra.mxu0 0.0
    %123 = vmatprep.subr.mxu0 0.0
    %124 = vmatpush1.msra.mxu0 0.0
    %125 = vmatprep.subr.mxu0 0.0
    %126 = vmatpush1.msra.mxu0 0.0
    %127 = vmatprep.subr.mxu0 0.0
    %128 = vmatpush1.msra.mxu0 0.0
    %129 = vmatprep.subr.mxu0 0.0
    %130 = vmatpush1.msra.mxu0 0.0
    %131 = vmatprep.subr.mxu0 0.0
    %132 = vmatpush1.msra.mxu0 0.0
    %133 = vmatprep.subr.mxu0 0.0
    %134 = vmatpush1.msra.mxu0 0.0
    %135 = vmatprep.subr.mxu0 0.0
    %136 = vmatpush1.msra.mxu0 0.0
    %137 = vmatprep.subr.mxu0 0.0
    %138 = vmatpush1.msra.mxu0 0.0
    %139 = vmatprep.subr.mxu0 0.0
    %140 = vmatpush1.msra.mxu0 0.0
    %141 = vmatprep.subr.mxu0 0.0
    %142 = vmatpush1.msra.mxu0 0.0
    %143 = vmatprep.mubr.f32.mxu0 0.0
    %144 = vmatmul.mubr.f32.gmra.mrb[0].mxu0 %v77
    %v145 = vpop.f32.mrb[0].mxu0
    %v146 = vadd.f32 %v68, %v145
    %v147 = vpop.f32.mrb[0].mxu0
    %v148 = vadd.f32 %v72, %v147
    %149 = vdwg.mxu0
    %v150 = vmax.f32 %v146, 0.0
    %v151 = vmax.f32 %v148, 0.0
    %v152 = vld [vmem:[#allocation4 + $0x40] sm:$0xff]
    %v153 = vld [vmem:[#allocation4 + $0x48] sm:$0xff]
    %v154 = vld [vmem:[#allocation4 + $0x50] sm:$0xff]
    %v155 = vld [vmem:[#allocation4 + $0x58] sm:$0xff]
    %v156 = vld [vmem:[#allocation4 + $0x60] sm:$0xff]
    %v157 = vld [vmem:[#allocation4 + $0x68] sm:$0xff]
    %v158 = vld [vmem:[#allocation4 + $0x70] sm:$0xff]
    %v159 = vld [vmem:[#allocation4 + $0x78] sm:$0xff]
    %v160 = vld [vmem:[#allocation4 + $0x80] sm:$0xff]
    %v161 = vld [vmem:[#allocation4 + $0x88] sm:$0xff]
    %v162 = vld [vmem:[#allocation4 + $0x90] sm:$0xff]
    %v163 = vld [vmem:[#allocation4 + $0x98] sm:$0xff]
    %v164 = vld [vmem:[#allocation4 + $0xa0] sm:$0xff]
    %v165 = vld [vmem:[#allocation4 + $0xa8] sm:$0xff]
    %v166 = vld [vmem:[#allocation4 + $0xb0] sm:$0xff]
    %v167 = vld [vmem:[#allocation4 + $0xb8] sm:$0xff]
    %v168 = vld [vmem:[#allocation4 + $0xc0] sm:$0xff]
    %v169 = vld [vmem:[#allocation4 + $0xc8] sm:$0xff]
    %v170 = vld [vmem:[#allocation4 + $0xd0] sm:$0xff]
    %v171 = vld [vmem:[#allocation4 + $0xd8] sm:$0xff]
    %v172 = vld [vmem:[#allocation4 + $0xe0] sm:$0xff]
    %v173 = vld [vmem:[#allocation4 + $0xe8] sm:$0xff]
    %v174 = vld [vmem:[#allocation4 + $0xf0] sm:$0xff]
    %v175 = vld [vmem:[#allocation4 + $0xf8] sm:$0xff]
    %v176 = vld [vmem:[#allocation4 + $0x100] sm:$0xff]
    %v177 = vld [vmem:[#allocation4 + $0x108] sm:$0xff]
    %v178 = vld [vmem:[#allocation4 + $0x110] sm:$0xff]
    %v179 = vld [vmem:[#allocation4 + $0x118] sm:$0xff]
    %v180 = vld [vmem:[#allocation4 + $0x120] sm:$0xff]
    %v181 = vld [vmem:[#allocation4 + $0x128] sm:$0xff]
    %v182 = vld [vmem:[#allocation4 + $0x130] sm:$0xff]
    %v183 = vld [vmem:[#allocation4 + $0x138] sm:$0xff]
    %v184 = vld [vmem:[#allocation4 + $0x140] sm:$0xff]
    %v185 = vld [vmem:[#allocation4 + $0x148] sm:$0xff]
    %v186 = vld [vmem:[#allocation4 + $0x150] sm:$0xff]
    %v187 = vld [vmem:[#allocation4 + $0x158] sm:$0xff]
    %v188 = vld [vmem:[#allocation4 + $0x160] sm:$0xff]
    %v189 = vld [vmem:[#allocation4 + $0x168] sm:$0xff]
    %v190 = vld [vmem:[#allocation4 + $0x170] sm:$0xff]
    %v191 = vld [vmem:[#allocation4 + $0x178] sm:$0xff]
    %v192 = vld [vmem:[#allocation4 + $0x180] sm:$0xff]
    %v193 = vld [vmem:[#allocation4 + $0x188] sm:$0xff]
    %v194 = vld [vmem:[#allocation4 + $0x190] sm:$0xff]
    %v195 = vld [vmem:[#allocation4 + $0x198] sm:$0xff]
    %v196 = vld [vmem:[#allocation4 + $0x1a0] sm:$0xff]
    %v197 = vld [vmem:[#allocation4 + $0x1a8] sm:$0xff]
    %v198 = vld [vmem:[#allocation4 + $0x1b0] sm:$0xff]
    %v199 = vld [vmem:[#allocation4 + $0x1b8] sm:$0xff]
    %v200 = vld [vmem:[#allocation4 + $0x1c0] sm:$0xff]
    %v201 = vld [vmem:[#allocation4 + $0x1c8] sm:$0xff]
    %v202 = vld [vmem:[#allocation4 + $0x1d0] sm:$0xff]
    %v203 = vld [vmem:[#allocation4 + $0x1d8] sm:$0xff]
    %v204 = vld [vmem:[#allocation4 + $0x1e0] sm:$0xff]
    %v205 = vld [vmem:[#allocation4 + $0x1e8] sm:$0xff]
    %v206 = vld [vmem:[#allocation4 + $0x1f0] sm:$0xff]
    %v207 = vld [vmem:[#allocation4 + $0x1f8] sm:$0xff]
    %v208 = vld [vmem:[#allocation4 + $0x200] sm:$0xff]
    %v209 = vld [vmem:[#allocation4 + $0x208] sm:$0xff]
    %v210 = vld [vmem:[#allocation4 + $0x210] sm:$0xff]
    %v211 = vld [vmem:[#allocation4 + $0x218] sm:$0xff]
    %v212 = vld [vmem:[#allocation4 + $0x220] sm:$0xff]
    %v213 = vld [vmem:[#allocation4 + $0x228] sm:$0xff]
    %v214 = vld [vmem:[#allocation4 + $0x230] sm:$0xff]
    %v215 = vld [vmem:[#allocation4 + $0x238] sm:$0xff]
    %s216 = scalar_lea.vmem [#allocation4], 2113
    %v217 = vld [vmem:[%s216] ss:$8 sm:$0x3]
    %v219 = vlaneseq
    %v220 = vshrl.u32 %v219, 7
    %v221 = vsub.s32 0, %v220
    %v222 = vrot.slane %v217, %v221
    %v223 = vlaneseq
    %v224 = vshrl.u32 %v223, 7
    %v225 = vsub.s32 1, %v224
    %v226 = vrot.slane %v217, %v225
    %229 = vmatprep.subr.mxu0 %v153
    %230 = vmatpush1.msra.mxu0 %v152
    %231 = vmatprep.subr.mxu0 %v155
    %232 = vmatpush1.msra.mxu0 %v154
    %233 = vmatprep.subr.mxu0 %v157
    %234 = vmatpush1.msra.mxu0 %v156
    %235 = vmatprep.subr.mxu0 %v159
    %236 = vmatpush1.msra.mxu0 %v158
    %237 = vmatprep.subr.mxu0 %v161
    %238 = vmatpush1.msra.mxu0 %v160
    %239 = vmatprep.subr.mxu0 %v163
    %240 = vmatpush1.msra.mxu0 %v162
    %241 = vmatprep.subr.mxu0 %v165
    %242 = vmatpush1.msra.mxu0 %v164
    %243 = vmatprep.subr.mxu0 %v167
    %244 = vmatpush1.msra.mxu0 %v166
    %245 = vmatprep.subr.mxu0 %v169
    %246 = vmatpush1.msra.mxu0 %v168
    %247 = vmatprep.subr.mxu0 %v171
    %248 = vmatpush1.msra.mxu0 %v170
    %249 = vmatprep.subr.mxu0 %v173
    %250 = vmatpush1.msra.mxu0 %v172
    %251 = vmatprep.subr.mxu0 %v175
    %252 = vmatpush1.msra.mxu0 %v174
    %253 = vmatprep.subr.mxu0 %v177
    %254 = vmatpush1.msra.mxu0 %v176
    %255 = vmatprep.subr.mxu0 %v179
    %256 = vmatpush1.msra.mxu0 %v178
    %257 = vmatprep.subr.mxu0 %v181
    %258 = vmatpush1.msra.mxu0 %v180
    %259 = vmatprep.subr.mxu0 %v183
    %260 = vmatpush1.msra.mxu0 %v182
    %261 = vmatprep.subr.mxu0 %v185
    %262 = vmatpush1.msra.mxu0 %v184
    %263 = vmatprep.subr.mxu0 %v187
    %264 = vmatpush1.msra.mxu0 %v186
    %265 = vmatprep.subr.mxu0 %v189
    %266 = vmatpush1.msra.mxu0 %v188
    %267 = vmatprep.subr.mxu0 %v191
    %268 = vmatpush1.msra.mxu0 %v190
    %269 = vmatprep.subr.mxu0 %v193
    %270 = vmatpush1.msra.mxu0 %v192
    %271 = vmatprep.subr.mxu0 %v195
    %272 = vmatpush1.msra.mxu0 %v194
    %273 = vmatprep.subr.mxu0 %v197
    %274 = vmatpush1.msra.mxu0 %v196
    %275 = vmatprep.subr.mxu0 %v199
    %276 = vmatpush1.msra.mxu0 %v198
    %277 = vmatprep.subr.mxu0 %v201
    %278 = vmatpush1.msra.mxu0 %v200
    %279 = vmatprep.subr.mxu0 %v203
    %280 = vmatpush1.msra.mxu0 %v202
    %281 = vmatprep.subr.mxu0 %v205
    %282 = vmatpush1.msra.mxu0 %v204
    %283 = vmatprep.subr.mxu0 %v207
    %284 = vmatpush1.msra.mxu0 %v206
    %285 = vmatprep.subr.mxu0 %v209
    %286 = vmatpush1.msra.mxu0 %v208
    %287 = vmatprep.subr.mxu0 %v211
    %288 = vmatpush1.msra.mxu0 %v210
    %289 = vmatprep.subr.mxu0 %v213
    %290 = vmatpush1.msra.mxu0 %v212
    %291 = vmatprep.subr.mxu0 %v215
    %292 = vmatpush1.msra.mxu0 %v214
    %293 = vmatprep.mubr.f32.mxu0 %v151
    %294 = vmatmul.mubr.f32.gmra.mrb[0].mxu0 %v150
    %v295 = vpop.f32.mrb[0].mxu0
    %v296 = vadd.f32 %v222, %v295
    %v297 = vpop.f32.mrb[0].mxu0
    %v298 = vadd.f32 %v226, %v297
    %299 = vdwg.mxu0
    %v300 = vmax.f32 %v296, 0.0
    %v301 = vmax.f32 %v298, 0.0
    %v302 = vld [vmem:[#allocation4 + $0x240] sm:$0xff]
    %v303 = vld [vmem:[#allocation4 + $0x248] sm:$0xff]
    %v304 = vld [vmem:[#allocation4 + $0x250] sm:$0xff]
    %v305 = vld [vmem:[#allocation4 + $0x258] sm:$0xff]
    %v306 = vld [vmem:[#allocation4 + $0x260] sm:$0xff]
    %v307 = vld [vmem:[#allocation4 + $0x268] sm:$0xff]
    %v308 = vld [vmem:[#allocation4 + $0x270] sm:$0xff]
    %v309 = vld [vmem:[#allocation4 + $0x278] sm:$0xff]
    %v310 = vld [vmem:[#allocation4 + $0x280] sm:$0xff]
    %v311 = vld [vmem:[#allocation4 + $0x288] sm:$0xff]
    %v312 = vld [vmem:[#allocation4 + $0x290] sm:$0xff]
    %v313 = vld [vmem:[#allocation4 + $0x298] sm:$0xff]
    %v314 = vld [vmem:[#allocation4 + $0x2a0] sm:$0xff]
    %v315 = vld [vmem:[#allocation4 + $0x2a8] sm:$0xff]
    %v316 = vld [vmem:[#allocation4 + $0x2b0] sm:$0xff]
    %v317 = vld [vmem:[#allocation4 + $0x2b8] sm:$0xff]
    %v318 = vld [vmem:[#allocation4 + $0x2c0] sm:$0xff]
    %v319 = vld [vmem:[#allocation4 + $0x2c8] sm:$0xff]
    %v320 = vld [vmem:[#allocation4 + $0x2d0] sm:$0xff]
    %v321 = vld [vmem:[#allocation4 + $0x2d8] sm:$0xff]
    %v322 = vld [vmem:[#allocation4 + $0x2e0] sm:$0xff]
    %v323 = vld [vmem:[#allocation4 + $0x2e8] sm:$0xff]
    %v324 = vld [vmem:[#allocation4 + $0x2f0] sm:$0xff]
    %v325 = vld [vmem:[#allocation4 + $0x2f8] sm:$0xff]
    %v326 = vld [vmem:[#allocation4 + $0x300] sm:$0xff]
    %v327 = vld [vmem:[#allocation4 + $0x308] sm:$0xff]
    %v328 = vld [vmem:[#allocation4 + $0x310] sm:$0xff]
    %v329 = vld [vmem:[#allocation4 + $0x318] sm:$0xff]
    %v330 = vld [vmem:[#allocation4 + $0x320] sm:$0xff]
    %v331 = vld [vmem:[#allocation4 + $0x328] sm:$0xff]
    %v332 = vld [vmem:[#allocation4 + $0x330] sm:$0xff]
    %v333 = vld [vmem:[#allocation4 + $0x338] sm:$0xff]
    %v334 = vld [vmem:[#allocation4 + $0x340] sm:$0xff]
    %v335 = vld [vmem:[#allocation4 + $0x348] sm:$0xff]
    %v336 = vld [vmem:[#allocation4 + $0x350] sm:$0xff]
    %v337 = vld [vmem:[#allocation4 + $0x358] sm:$0xff]
    %v338 = vld [vmem:[#allocation4 + $0x360] sm:$0xff]
    %v339 = vld [vmem:[#allocation4 + $0x368] sm:$0xff]
    %v340 = vld [vmem:[#allocation4 + $0x370] sm:$0xff]
    %v341 = vld [vmem:[#allocation4 + $0x378] sm:$0xff]
    %v342 = vld [vmem:[#allocation4 + $0x380] sm:$0xff]
    %v343 = vld [vmem:[#allocation4 + $0x388] sm:$0xff]
    %v344 = vld [vmem:[#allocation4 + $0x390] sm:$0xff]
    %v345 = vld [vmem:[#allocation4 + $0x398] sm:$0xff]
    %v346 = vld [vmem:[#allocation4 + $0x3a0] sm:$0xff]
    %v347 = vld [vmem:[#allocation4 + $0x3a8] sm:$0xff]
    %v348 = vld [vmem:[#allocation4 + $0x3b0] sm:$0xff]
    %v349 = vld [vmem:[#allocation4 + $0x3b8] sm:$0xff]
    %v350 = vld [vmem:[#allocation4 + $0x3c0] sm:$0xff]
    %v351 = vld [vmem:[#allocation4 + $0x3c8] sm:$0xff]
    %v352 = vld [vmem:[#allocation4 + $0x3d0] sm:$0xff]
    %v353 = vld [vmem:[#allocation4 + $0x3d8] sm:$0xff]
    %v354 = vld [vmem:[#allocation4 + $0x3e0] sm:$0xff]
    %v355 = vld [vmem:[#allocation4 + $0x3e8] sm:$0xff]
    %v356 = vld [vmem:[#allocation4 + $0x3f0] sm:$0xff]
    %v357 = vld [vmem:[#allocation4 + $0x3f8] sm:$0xff]
    %v358 = vld [vmem:[#allocation4 + $0x400] sm:$0xff]
    %v359 = vld [vmem:[#allocation4 + $0x408] sm:$0xff]
    %v360 = vld [vmem:[#allocation4 + $0x410] sm:$0xff]
    %v361 = vld [vmem:[#allocation4 + $0x418] sm:$0xff]
    %v362 = vld [vmem:[#allocation4 + $0x420] sm:$0xff]
    %v363 = vld [vmem:[#allocation4 + $0x428] sm:$0xff]
    %v364 = vld [vmem:[#allocation4 + $0x430] sm:$0xff]
    %v365 = vld [vmem:[#allocation4 + $0x438] sm:$0xff]
    %s366 = scalar_lea.vmem [#allocation4], 2114
    %v367 = vld [vmem:[%s366] ss:$8 sm:$0x3]
    %v369 = vlaneseq
    %v370 = vshrl.u32 %v369, 7
    %v371 = vsub.s32 0, %v370
    %v372 = vrot.slane %v367, %v371
    %v373 = vlaneseq
    %v374 = vshrl.u32 %v373, 7
    %v375 = vsub.s32 1, %v374
    %v376 = vrot.slane %v367, %v375
    %379 = vmatprep.subr.mxu0 %v303
    %380 = vmatpush1.msra.mxu0 %v302
    %381 = vmatprep.subr.mxu0 %v305
    %382 = vmatpush1.msra.mxu0 %v304
    %383 = vmatprep.subr.mxu0 %v307
    %384 = vmatpush1.msra.mxu0 %v306
    %385 = vmatprep.subr.mxu0 %v309
    %386 = vmatpush1.msra.mxu0 %v308
    %387 = vmatprep.subr.mxu0 %v311
    %388 = vmatpush1.msra.mxu0 %v310
    %389 = vmatprep.subr.mxu0 %v313
    %390 = vmatpush1.msra.mxu0 %v312
    %391 = vmatprep.subr.mxu0 %v315
    %392 = vmatpush1.msra.mxu0 %v314
    %393 = vmatprep.subr.mxu0 %v317
    %394 = vmatpush1.msra.mxu0 %v316
    %395 = vmatprep.subr.mxu0 %v319
    %396 = vmatpush1.msra.mxu0 %v318
    %397 = vmatprep.subr.mxu0 %v321
    %398 = vmatpush1.msra.mxu0 %v320
    %399 = vmatprep.subr.mxu0 %v323
    %400 = vmatpush1.msra.mxu0 %v322
    %401 = vmatprep.subr.mxu0 %v325
    %402 = vmatpush1.msra.mxu0 %v324
    %403 = vmatprep.subr.mxu0 %v327
    %404 = vmatpush1.msra.mxu0 %v326
    %405 = vmatprep.subr.mxu0 %v329
    %406 = vmatpush1.msra.mxu0 %v328
    %407 = vmatprep.subr.mxu0 %v331
    %408 = vmatpush1.msra.mxu0 %v330
    %409 = vmatprep.subr.mxu0 %v333
    %410 = vmatpush1.msra.mxu0 %v332
    %411 = vmatprep.subr.mxu0 %v335
    %412 = vmatpush1.msra.mxu0 %v334
    %413 = vmatprep.subr.mxu0 %v337
    %414 = vmatpush1.msra.mxu0 %v336
    %415 = vmatprep.subr.mxu0 %v339
    %416 = vmatpush1.msra.mxu0 %v338
    %417 = vmatprep.subr.mxu0 %v341
    %418 = vmatpush1.msra.mxu0 %v340
    %419 = vmatprep.subr.mxu0 %v343
    %420 = vmatpush1.msra.mxu0 %v342
    %421 = vmatprep.subr.mxu0 %v345
    %422 = vmatpush1.msra.mxu0 %v344
    %423 = vmatprep.subr.mxu0 %v347
    %424 = vmatpush1.msra.mxu0 %v346
    %425 = vmatprep.subr.mxu0 %v349
    %426 = vmatpush1.msra.mxu0 %v348
    %427 = vmatprep.subr.mxu0 %v351
    %428 = vmatpush1.msra.mxu0 %v350
    %429 = vmatprep.subr.mxu0 %v353
    %430 = vmatpush1.msra.mxu0 %v352
    %431 = vmatprep.subr.mxu0 %v355
    %432 = vmatpush1.msra.mxu0 %v354
    %433 = vmatprep.subr.mxu0 %v357
    %434 = vmatpush1.msra.mxu0 %v356
    %435 = vmatprep.subr.mxu0 %v359
    %436 = vmatpush1.msra.mxu0 %v358
    %437 = vmatprep.subr.mxu0 %v361
    %438 = vmatpush1.msra.mxu0 %v360
    %439 = vmatprep.subr.mxu0 %v363
    %440 = vmatpush1.msra.mxu0 %v362
    %441 = vmatprep.subr.mxu0 %v365
    %442 = vmatpush1.msra.mxu0 %v364
    %443 = vmatprep.mubr.f32.mxu0 %v301
    %444 = vmatmul.mubr.f32.gmra.mrb[0].mxu0 %v300
    %v445 = vpop.f32.mrb[0].mxu0
    %v446 = vadd.f32 %v372, %v445
    %v447 = vpop.f32.mrb[0].mxu0
    %v448 = vadd.f32 %v376, %v447
    %449 = vdwg.mxu0
    %v450 = vmul.f32 %v446, 0.3
    %v451 = vmul.f32 %v448, 0.3
    %v452 = vadd.f32 %v146, %v450
    %v453 = vadd.f32 %v148, %v451
    %v454 = vmax.f32 %v452, 0.0
    %v455 = vmax.f32 %v453, 0.0
    %v456 = vld [vmem:[#allocation4 + $0x440] sm:$0xff]
    %v457 = vld [vmem:[#allocation4 + $0x448] sm:$0xff]
    %v458 = vld [vmem:[#allocation4 + $0x450] sm:$0xff]
    %v459 = vld [vmem:[#allocation4 + $0x458] sm:$0xff]
    %v460 = vld [vmem:[#allocation4 + $0x460] sm:$0xff]
    %v461 = vld [vmem:[#allocation4 + $0x468] sm:$0xff]
    %v462 = vld [vmem:[#allocation4 + $0x470] sm:$0xff]
    %v463 = vld [vmem:[#allocation4 + $0x478] sm:$0xff]
    %v464 = vld [vmem:[#allocation4 + $0x480] sm:$0xff]
    %v465 = vld [vmem:[#allocation4 + $0x488] sm:$0xff]
    %v466 = vld [vmem:[#allocation4 + $0x490] sm:$0xff]
    %v467 = vld [vmem:[#allocation4 + $0x498] sm:$0xff]
    %v468 = vld [vmem:[#allocation4 + $0x4a0] sm:$0xff]
    %v469 = vld [vmem:[#allocation4 + $0x4a8] sm:$0xff]
    %v470 = vld [vmem:[#allocation4 + $0x4b0] sm:$0xff]
    %v471 = vld [vmem:[#allocation4 + $0x4b8] sm:$0xff]
    %v472 = vld [vmem:[#allocation4 + $0x4c0] sm:$0xff]
    %v473 = vld [vmem:[#allocation4 + $0x4c8] sm:$0xff]
    %v474 = vld [vmem:[#allocation4 + $0x4d0] sm:$0xff]
    %v475 = vld [vmem:[#allocation4 + $0x4d8] sm:$0xff]
    %v476 = vld [vmem:[#allocation4 + $0x4e0] sm:$0xff]
    %v477 = vld [vmem:[#allocation4 + $0x4e8] sm:$0xff]
    %v478 = vld [vmem:[#allocation4 + $0x4f0] sm:$0xff]
    %v479 = vld [vmem:[#allocation4 + $0x4f8] sm:$0xff]
    %v480 = vld [vmem:[#allocation4 + $0x500] sm:$0xff]
    %v481 = vld [vmem:[#allocation4 + $0x508] sm:$0xff]
    %v482 = vld [vmem:[#allocation4 + $0x510] sm:$0xff]
    %v483 = vld [vmem:[#allocation4 + $0x518] sm:$0xff]
    %v484 = vld [vmem:[#allocation4 + $0x520] sm:$0xff]
    %v485 = vld [vmem:[#allocation4 + $0x528] sm:$0xff]
    %v486 = vld [vmem:[#allocation4 + $0x530] sm:$0xff]
    %v487 = vld [vmem:[#allocation4 + $0x538] sm:$0xff]
    %v488 = vld [vmem:[#allocation4 + $0x540] sm:$0xff]
    %v489 = vld [vmem:[#allocation4 + $0x548] sm:$0xff]
    %v490 = vld [vmem:[#allocation4 + $0x550] sm:$0xff]
    %v491 = vld [vmem:[#allocation4 + $0x558] sm:$0xff]
    %v492 = vld [vmem:[#allocation4 + $0x560] sm:$0xff]
    %v493 = vld [vmem:[#allocation4 + $0x568] sm:$0xff]
    %v494 = vld [vmem:[#allocation4 + $0x570] sm:$0xff]
    %v495 = vld [vmem:[#allocation4 + $0x578] sm:$0xff]
    %v496 = vld [vmem:[#allocation4 + $0x580] sm:$0xff]
    %v497 = vld [vmem:[#allocation4 + $0x588] sm:$0xff]
    %v498 = vld [vmem:[#allocation4 + $0x590] sm:$0xff]
    %v499 = vld [vmem:[#allocation4 + $0x598] sm:$0xff]
    %v500 = vld [vmem:[#allocation4 + $0x5a0] sm:$0xff]
    %v501 = vld [vmem:[#allocation4 + $0x5a8] sm:$0xff]
    %v502 = vld [vmem:[#allocation4 + $0x5b0] sm:$0xff]
    %v503 = vld [vmem:[#allocation4 + $0x5b8] sm:$0xff]
    %v504 = vld [vmem:[#allocation4 + $0x5c0] sm:$0xff]
    %v505 = vld [vmem:[#allocation4 + $0x5c8] sm:$0xff]
    %v506 = vld [vmem:[#allocation4 + $0x5d0] sm:$0xff]
    %v507 = vld [vmem:[#allocation4 + $0x5d8] sm:$0xff]
    %v508 = vld [vmem:[#allocation4 + $0x5e0] sm:$0xff]
    %v509 = vld [vmem:[#allocation4 + $0x5e8] sm:$0xff]
    %v510 = vld [vmem:[#allocation4 + $0x5f0] sm:$0xff]
    %v511 = vld [vmem:[#allocation4 + $0x5f8] sm:$0xff]
    %v512 = vld [vmem:[#allocation4 + $0x600] sm:$0xff]
    %v513 = vld [vmem:[#allocation4 + $0x608] sm:$0xff]
    %v514 = vld [vmem:[#allocation4 + $0x610] sm:$0xff]
    %v515 = vld [vmem:[#allocation4 + $0x618] sm:$0xff]
    %v516 = vld [vmem:[#allocation4 + $0x620] sm:$0xff]
    %v517 = vld [vmem:[#allocation4 + $0x628] sm:$0xff]
    %v518 = vld [vmem:[#allocation4 + $0x630] sm:$0xff]
    %v519 = vld [vmem:[#allocation4 + $0x638] sm:$0xff]
    %s520 = scalar_lea.vmem [#allocation4], 2115
    %v521 = vld [vmem:[%s520] ss:$8 sm:$0x3]
    %v523 = vlaneseq
    %v524 = vshrl.u32 %v523, 7
    %v525 = vsub.s32 0, %v524
    %v526 = vrot.slane %v521, %v525
    %v527 = vlaneseq
    %v528 = vshrl.u32 %v527, 7
    %v529 = vsub.s32 1, %v528
    %v530 = vrot.slane %v521, %v529
    %533 = vmatprep.subr.mxu0 %v457
    %534 = vmatpush1.msra.mxu0 %v456
    %535 = vmatprep.subr.mxu0 %v459
    %536 = vmatpush1.msra.mxu0 %v458
    %537 = vmatprep.subr.mxu0 %v461
    %538 = vmatpush1.msra.mxu0 %v460
    %539 = vmatprep.subr.mxu0 %v463
    %540 = vmatpush1.msra.mxu0 %v462
    %541 = vmatprep.subr.mxu0 %v465
    %542 = vmatpush1.msra.mxu0 %v464
    %543 = vmatprep.subr.mxu0 %v467
    %544 = vmatpush1.msra.mxu0 %v466
    %545 = vmatprep.subr.mxu0 %v469
    %546 = vmatpush1.msra.mxu0 %v468
    %547 = vmatprep.subr.mxu0 %v471
    %548 = vmatpush1.msra.mxu0 %v470
    %549 = vmatprep.subr.mxu0 %v473
    %550 = vmatpush1.msra.mxu0 %v472
    %551 = vmatprep.subr.mxu0 %v475
    %552 = vmatpush1.msra.mxu0 %v474
    %553 = vmatprep.subr.mxu0 %v477
    %554 = vmatpush1.msra.mxu0 %v476
    %555 = vmatprep.subr.mxu0 %v479
    %556 = vmatpush1.msra.mxu0 %v478
    %557 = vmatprep.subr.mxu0 %v481
    %558 = vmatpush1.msra.mxu0 %v480
    %559 = vmatprep.subr.mxu0 %v483
    %560 = vmatpush1.msra.mxu0 %v482
    %561 = vmatprep.subr.mxu0 %v485
    %562 = vmatpush1.msra.mxu0 %v484
    %563 = vmatprep.subr.mxu0 %v487
    %564 = vmatpush1.msra.mxu0 %v486
    %565 = vmatprep.subr.mxu0 %v489
    %566 = vmatpush1.msra.mxu0 %v488
    %567 = vmatprep.subr.mxu0 %v491
    %568 = vmatpush1.msra.mxu0 %v490
    %569 = vmatprep.subr.mxu0 %v493
    %570 = vmatpush1.msra.mxu0 %v492
    %571 = vmatprep.subr.mxu0 %v495
    %572 = vmatpush1.msra.mxu0 %v494
    %573 = vmatprep.subr.mxu0 %v497
    %574 = vmatpush1.msra.mxu0 %v496
    %575 = vmatprep.subr.mxu0 %v499
    %576 = vmatpush1.msra.mxu0 %v498
    %577 = vmatprep.subr.mxu0 %v501
    %578 = vmatpush1.msra.mxu0 %v500
    %579 = vmatprep.subr.mxu0 %v503
    %580 = vmatpush1.msra.mxu0 %v502
    %581 = vmatprep.subr.mxu0 %v505
    %582 = vmatpush1.msra.mxu0 %v504
    %583 = vmatprep.subr.mxu0 %v507
    %584 = vmatpush1.msra.mxu0 %v506
    %585 = vmatprep.subr.mxu0 %v509
    %586 = vmatpush1.msra.mxu0 %v508
    %587 = vmatprep.subr.mxu0 %v511
    %588 = vmatpush1.msra.mxu0 %v510
    %589 = vmatprep.subr.mxu0 %v513
    %590 = vmatpush1.msra.mxu0 %v512
    %591 = vmatprep.subr.mxu0 %v515
    %592 = vmatpush1.msra.mxu0 %v514
    %593 = vmatprep.subr.mxu0 %v517
    %594 = vmatpush1.msra.mxu0 %v516
    %595 = vmatprep.subr.mxu0 %v519
    %596 = vmatpush1.msra.mxu0 %v518
    %597 = vmatprep.mubr.f32.mxu0 %v455
    %598 = vmatmul.mubr.f32.gmra.mrb[0].mxu0 %v454
    %v599 = vpop.f32.mrb[0].mxu0
    %v600 = vadd.f32 %v526, %v599
    %v601 = vpop.f32.mrb[0].mxu0
    %v602 = vadd.f32 %v530, %v601
    %603 = vdwg.mxu0
    %v604 = vmax.f32 %v600, 0.0
    %v605 = vmax.f32 %v602, 0.0
    %v606 = vld [vmem:[#allocation4 + $0x640] sm:$0xff]
    %v607 = vld [vmem:[#allocation4 + $0x648] sm:$0xff]
    %v608 = vld [vmem:[#allocation4 + $0x650] sm:$0xff]
    %v609 = vld [vmem:[#allocation4 + $0x658] sm:$0xff]
    %v610 = vld [vmem:[#allocation4 + $0x660] sm:$0xff]
    %v611 = vld [vmem:[#allocation4 + $0x668] sm:$0xff]
    %v612 = vld [vmem:[#allocation4 + $0x670] sm:$0xff]
    %v613 = vld [vmem:[#allocation4 + $0x678] sm:$0xff]
    %v614 = vld [vmem:[#allocation4 + $0x680] sm:$0xff]
    %v615 = vld [vmem:[#allocation4 + $0x688] sm:$0xff]
    %v616 = vld [vmem:[#allocation4 + $0x690] sm:$0xff]
    %v617 = vld [vmem:[#allocation4 + $0x698] sm:$0xff]
    %v618 = vld [vmem:[#allocation4 + $0x6a0] sm:$0xff]
    %v619 = vld [vmem:[#allocation4 + $0x6a8] sm:$0xff]
    %v620 = vld [vmem:[#allocation4 + $0x6b0] sm:$0xff]
    %v621 = vld [vmem:[#allocation4 + $0x6b8] sm:$0xff]
    %v622 = vld [vmem:[#allocation4 + $0x6c0] sm:$0xff]
    %v623 = vld [vmem:[#allocation4 + $0x6c8] sm:$0xff]
    %v624 = vld [vmem:[#allocation4 + $0x6d0] sm:$0xff]
    %v625 = vld [vmem:[#allocation4 + $0x6d8] sm:$0xff]
    %v626 = vld [vmem:[#allocation4 + $0x6e0] sm:$0xff]
    %v627 = vld [vmem:[#allocation4 + $0x6e8] sm:$0xff]
    %v628 = vld [vmem:[#allocation4 + $0x6f0] sm:$0xff]
    %v629 = vld [vmem:[#allocation4 + $0x6f8] sm:$0xff]
    %v630 = vld [vmem:[#allocation4 + $0x700] sm:$0xff]
    %v631 = vld [vmem:[#allocation4 + $0x708] sm:$0xff]
    %v632 = vld [vmem:[#allocation4 + $0x710] sm:$0xff]
    %v633 = vld [vmem:[#allocation4 + $0x718] sm:$0xff]
    %v634 = vld [vmem:[#allocation4 + $0x720] sm:$0xff]
    %v635 = vld [vmem:[#allocation4 + $0x728] sm:$0xff]
    %v636 = vld [vmem:[#allocation4 + $0x730] sm:$0xff]
    %v637 = vld [vmem:[#allocation4 + $0x738] sm:$0xff]
    %v638 = vld [vmem:[#allocation4 + $0x740] sm:$0xff]
    %v639 = vld [vmem:[#allocation4 + $0x748] sm:$0xff]
    %v640 = vld [vmem:[#allocation4 + $0x750] sm:$0xff]
    %v641 = vld [vmem:[#allocation4 + $0x758] sm:$0xff]
    %v642 = vld [vmem:[#allocation4 + $0x760] sm:$0xff]
    %v643 = vld [vmem:[#allocation4 + $0x768] sm:$0xff]
    %v644 = vld [vmem:[#allocation4 + $0x770] sm:$0xff]
    %v645 = vld [vmem:[#allocation4 + $0x778] sm:$0xff]
    %v646 = vld [vmem:[#allocation4 + $0x780] sm:$0xff]
    %v647 = vld [vmem:[#allocation4 + $0x788] sm:$0xff]
    %v648 = vld [vmem:[#allocation4 + $0x790] sm:$0xff]
    %v649 = vld [vmem:[#allocation4 + $0x798] sm:$0xff]
    %v650 = vld [vmem:[#allocation4 + $0x7a0] sm:$0xff]
    %v651 = vld [vmem:[#allocation4 + $0x7a8] sm:$0xff]
    %v652 = vld [vmem:[#allocation4 + $0x7b0] sm:$0xff]
    %v653 = vld [vmem:[#allocation4 + $0x7b8] sm:$0xff]
    %v654 = vld [vmem:[#allocation4 + $0x7c0] sm:$0xff]
    %v655 = vld [vmem:[#allocation4 + $0x7c8] sm:$0xff]
    %v656 = vld [vmem:[#allocation4 + $0x7d0] sm:$0xff]
    %v657 = vld [vmem:[#allocation4 + $0x7d8] sm:$0xff]
    %v658 = vld [vmem:[#allocation4 + $0x7e0] sm:$0xff]
    %v659 = vld [vmem:[#allocation4 + $0x7e8] sm:$0xff]
    %v660 = vld [vmem:[#allocation4 + $0x7f0] sm:$0xff]
    %v661 = vld [vmem:[#allocation4 + $0x7f8] sm:$0xff]
    %v662 = vld [vmem:[#allocation4 + $0x800] sm:$0xff]
    %v663 = vld [vmem:[#allocation4 + $0x808] sm:$0xff]
    %v664 = vld [vmem:[#allocation4 + $0x810] sm:$0xff]
    %v665 = vld [vmem:[#allocation4 + $0x818] sm:$0xff]
    %v666 = vld [vmem:[#allocation4 + $0x820] sm:$0xff]
    %v667 = vld [vmem:[#allocation4 + $0x828] sm:$0xff]
    %v668 = vld [vmem:[#allocation4 + $0x830] sm:$0xff]
    %v669 = vld [vmem:[#allocation4 + $0x838] sm:$0xff]
    %s670 = scalar_lea.vmem [#allocation4], 2116
    %v671 = vld [vmem:[%s670] ss:$8 sm:$0x3]
    %v673 = vlaneseq
    %v674 = vshrl.u32 %v673, 7
    %v675 = vsub.s32 0, %v674
    %v676 = vrot.slane %v671, %v675
    %v677 = vlaneseq
    %v678 = vshrl.u32 %v677, 7
    %v679 = vsub.s32 1, %v678
    %v680 = vrot.slane %v671, %v679
    %683 = vmatprep.subr.mxu0 %v607
    %684 = vmatpush1.msra.mxu0 %v606
    %685 = vmatprep.subr.mxu0 %v609
    %686 = vmatpush1.msra.mxu0 %v608
    %687 = vmatprep.subr.mxu0 %v611
    %688 = vmatpush1.msra.mxu0 %v610
    %689 = vmatprep.subr.mxu0 %v613
    %690 = vmatpush1.msra.mxu0 %v612
    %691 = vmatprep.subr.mxu0 %v615
    %692 = vmatpush1.msra.mxu0 %v614
    %693 = vmatprep.subr.mxu0 %v617
    %694 = vmatpush1.msra.mxu0 %v616
    %695 = vmatprep.subr.mxu0 %v619
    %696 = vmatpush1.msra.mxu0 %v618
    %697 = vmatprep.subr.mxu0 %v621
    %698 = vmatpush1.msra.mxu0 %v620
    %699 = vmatprep.subr.mxu0 %v623
    %700 = vmatpush1.msra.mxu0 %v622
    %701 = vmatprep.subr.mxu0 %v625
    %702 = vmatpush1.msra.mxu0 %v624
    %703 = vmatprep.subr.mxu0 %v627
    %704 = vmatpush1.msra.mxu0 %v626
    %705 = vmatprep.subr.mxu0 %v629
    %706 = vmatpush1.msra.mxu0 %v628
    %707 = vmatprep.subr.mxu0 %v631
    %708 = vmatpush1.msra.mxu0 %v630
    %709 = vmatprep.subr.mxu0 %v633
    %710 = vmatpush1.msra.mxu0 %v632
    %711 = vmatprep.subr.mxu0 %v635
    %712 = vmatpush1.msra.mxu0 %v634
    %713 = vmatprep.subr.mxu0 %v637
    %714 = vmatpush1.msra.mxu0 %v636
    %715 = vmatprep.subr.mxu0 %v639
    %716 = vmatpush1.msra.mxu0 %v638
    %717 = vmatprep.subr.mxu0 %v641
    %718 = vmatpush1.msra.mxu0 %v640
    %719 = vmatprep.subr.mxu0 %v643
    %720 = vmatpush1.msra.mxu0 %v642
    %721 = vmatprep.subr.mxu0 %v645
    %722 = vmatpush1.msra.mxu0 %v644
    %723 = vmatprep.subr.mxu0 %v647
    %724 = vmatpush1.msra.mxu0 %v646
    %725 = vmatprep.subr.mxu0 %v649
    %726 = vmatpush1.msra.mxu0 %v648
    %727 = vmatprep.subr.mxu0 %v651
    %728 = vmatpush1.msra.mxu0 %v650
    %729 = vmatprep.subr.mxu0 %v653
    %730 = vmatpush1.msra.mxu0 %v652
    %731 = vmatprep.subr.mxu0 %v655
    %732 = vmatpush1.msra.mxu0 %v654
    %733 = vmatprep.subr.mxu0 %v657
    %734 = vmatpush1.msra.mxu0 %v656
    %735 = vmatprep.subr.mxu0 %v659
    %736 = vmatpush1.msra.mxu0 %v658
    %737 = vmatprep.subr.mxu0 %v661
    %738 = vmatpush1.msra.mxu0 %v660
    %739 = vmatprep.subr.mxu0 %v663
    %740 = vmatpush1.msra.mxu0 %v662
    %741 = vmatprep.subr.mxu0 %v665
    %742 = vmatpush1.msra.mxu0 %v664
    %743 = vmatprep.subr.mxu0 %v667
    %744 = vmatpush1.msra.mxu0 %v666
    %745 = vmatprep.subr.mxu0 %v669
    %746 = vmatpush1.msra.mxu0 %v668
    %747 = vmatprep.mubr.f32.mxu0 %v605
    %748 = vmatmul.mubr.f32.gmra.mrb[0].mxu0 %v604
    %v749 = vpop.f32.mrb[0].mxu0
    %v750 = vadd.f32 %v676, %v749
    %v751 = vpop.f32.mrb[0].mxu0
    %v752 = vadd.f32 %v680, %v751
    %753 = vdwg.mxu0
    %v754 = vmul.f32 %v750, 0.3
    %v755 = vmul.f32 %v752, 0.3
    %v756 = vadd.f32 %v452, %v754
    %v757 = vadd.f32 %v453, %v755
    %v758 = vld [vmem:[#allocation6] sm:$0xff]
    %v759 = vld [vmem:[#allocation6 + $0x8] sm:$0xff]
    %v760 = vld [vmem:[#allocation6 + $0x10] sm:$0xff]
    %v761 = vld [vmem:[#allocation6 + $0x18] sm:$0xff]
    %v762 = vld [vmem:[#allocation6 + $0x20] sm:$0xff]
    %v763 = vld [vmem:[#allocation6 + $0x28] sm:$0xff]
    %v764 = vld [vmem:[#allocation6 + $0x30] sm:$0xff]
    %v765 = vld [vmem:[#allocation6 + $0x38] sm:$0xff]
    %v766 = vld [vmem:[#allocation6 + $0x40] sm:$0xff]
    %v767 = vld [vmem:[#allocation6 + $0x48] sm:$0xff]
    %v768 = vld [vmem:[#allocation6 + $0x50] sm:$0xff]
    %v769 = vld [vmem:[#allocation6 + $0x58] sm:$0xff]
    %v770 = vld [vmem:[#allocation6 + $0x60] sm:$0xff]
    %v771 = vld [vmem:[#allocation6 + $0x68] sm:$0xff]
    %v772 = vld [vmem:[#allocation6 + $0x70] sm:$0xff]
    %v773 = vld [vmem:[#allocation6 + $0x78] sm:$0xff]
    %v774 = vld [vmem:[#allocation6 + $0x80] sm:$0xff]
    %v775 = vld [vmem:[#allocation6 + $0x88] sm:$0xff]
    %v776 = vld [vmem:[#allocation6 + $0x90] sm:$0xff]
    %v777 = vld [vmem:[#allocation6 + $0x98] sm:$0xff]
    %v778 = vld [vmem:[#allocation6 + $0xa0] sm:$0xff]
    %v779 = vld [vmem:[#allocation6 + $0xa8] sm:$0xff]
    %v780 = vld [vmem:[#allocation6 + $0xb0] sm:$0xff]
    %v781 = vld [vmem:[#allocation6 + $0xb8] sm:$0xff]
    %v782 = vld [vmem:[#allocation6 + $0xc0] sm:$0xff]
    %v783 = vld [vmem:[#allocation6 + $0xc8] sm:$0xff]
    %v784 = vld [vmem:[#allocation6 + $0xd0] sm:$0xff]
    %v785 = vld [vmem:[#allocation6 + $0xd8] sm:$0xff]
    %v786 = vld [vmem:[#allocation6 + $0xe0] sm:$0xff]
    %v787 = vld [vmem:[#allocation6 + $0xe8] sm:$0xff]
    %v788 = vld [vmem:[#allocation6 + $0xf0] sm:$0xff]
    %v789 = vld [vmem:[#allocation6 + $0xf8] sm:$0xff]
    %v790 = vld [vmem:[#allocation6 + $0x100] sm:$0xff]
    %v791 = vld [vmem:[#allocation6 + $0x108] sm:$0xff]
    %v792 = vld [vmem:[#allocation6 + $0x110] sm:$0xff]
    %v793 = vld [vmem:[#allocation6 + $0x118] sm:$0xff]
    %v794 = vld [vmem:[#allocation6 + $0x120] sm:$0xff]
    %v795 = vld [vmem:[#allocation6 + $0x128] sm:$0xff]
    %v796 = vld [vmem:[#allocation6 + $0x130] sm:$0xff]
    %v797 = vld [vmem:[#allocation6 + $0x138] sm:$0xff]
    %v798 = vld [vmem:[#allocation6 + $0x140] sm:$0xff]
    %v799 = vld [vmem:[#allocation6 + $0x148] sm:$0xff]
    %v800 = vld [vmem:[#allocation6 + $0x150] sm:$0xff]
    %v801 = vld [vmem:[#allocation6 + $0x158] sm:$0xff]
    %v802 = vld [vmem:[#allocation6 + $0x160] sm:$0xff]
    %v803 = vld [vmem:[#allocation6 + $0x168] sm:$0xff]
    %v804 = vld [vmem:[#allocation6 + $0x170] sm:$0xff]
    %v805 = vld [vmem:[#allocation6 + $0x178] sm:$0xff]
    %v806 = vld [vmem:[#allocation6 + $0x180] sm:$0xff]
    %v807 = vld [vmem:[#allocation6 + $0x188] sm:$0xff]
    %v808 = vld [vmem:[#allocation6 + $0x190] sm:$0xff]
    %v809 = vld [vmem:[#allocation6 + $0x198] sm:$0xff]
    %v810 = vld [vmem:[#allocation6 + $0x1a0] sm:$0xff]
    %v811 = vld [vmem:[#allocation6 + $0x1a8] sm:$0xff]
    %v812 = vld [vmem:[#allocation6 + $0x1b0] sm:$0xff]
    %v813 = vld [vmem:[#allocation6 + $0x1b8] sm:$0xff]
    %v814 = vld [vmem:[#allocation6 + $0x1c0] sm:$0xff]
    %v815 = vld [vmem:[#allocation6 + $0x1c8] sm:$0xff]
    %v816 = vld [vmem:[#allocation6 + $0x1d0] sm:$0xff]
    %v817 = vld [vmem:[#allocation6 + $0x1d8] sm:$0xff]
    %v818 = vld [vmem:[#allocation6 + $0x1e0] sm:$0xff]
    %v819 = vld [vmem:[#allocation6 + $0x1e8] sm:$0xff]
    %v820 = vld [vmem:[#allocation6 + $0x1f0] sm:$0xff]
    %v821 = vld [vmem:[#allocation6 + $0x1f8] sm:$0xff]
    %v822 = vld [vmem:[#allocation6 + $0x200] sm:$0xff]
    %v823 = vld [vmem:[#allocation6 + $0x208] sm:$0xff]
    %v824 = vld [vmem:[#allocation6 + $0x210] sm:$0xff]
    %v825 = vld [vmem:[#allocation6 + $0x218] sm:$0xff]
    %v826 = vld [vmem:[#allocation6 + $0x220] sm:$0xff]
    %v827 = vld [vmem:[#allocation6 + $0x228] sm:$0xff]
    %v828 = vld [vmem:[#allocation6 + $0x230] sm:$0xff]
    %v829 = vld [vmem:[#allocation6 + $0x238] sm:$0xff]
    %v830 = vld [vmem:[#allocation6 + $0x240] sm:$0xff]
    %v831 = vld [vmem:[#allocation6 + $0x248] sm:$0xff]
    %v832 = vld [vmem:[#allocation6 + $0x250] sm:$0xff]
    %v833 = vld [vmem:[#allocation6 + $0x258] sm:$0xff]
    %v834 = vld [vmem:[#allocation6 + $0x260] sm:$0xff]
    %v835 = vld [vmem:[#allocation6 + $0x268] sm:$0xff]
    %v836 = vld [vmem:[#allocation6 + $0x270] sm:$0xff]
    %v837 = vld [vmem:[#allocation6 + $0x278] sm:$0xff]
    %v838 = vld [vmem:[#allocation6 + $0x280] sm:$0xff]
    %v839 = vld [vmem:[#allocation6 + $0x288] sm:$0xff]
    %v840 = vld [vmem:[#allocation6 + $0x290] sm:$0xff]
    %v841 = vld [vmem:[#allocation6 + $0x298] sm:$0xff]
    %v842 = vld [vmem:[#allocation6 + $0x2a0] sm:$0xff]
    %v843 = vld [vmem:[#allocation6 + $0x2a8] sm:$0xff]
    %v844 = vld [vmem:[#allocation6 + $0x2b0] sm:$0xff]
    %v845 = vld [vmem:[#allocation6 + $0x2b8] sm:$0xff]
    %v846 = vld [vmem:[#allocation6 + $0x2c0] sm:$0xff]
    %v847 = vld [vmem:[#allocation6 + $0x2c8] sm:$0xff]
    %v848 = vld [vmem:[#allocation6 + $0x2d0] sm:$0xff]
    %v849 = vld [vmem:[#allocation6 + $0x2d8] sm:$0xff]
    %v850 = vld [vmem:[#allocation6 + $0x2e0] sm:$0xff]
    %v851 = vld [vmem:[#allocation6 + $0x2e8] sm:$0xff]
    %v852 = vld [vmem:[#allocation6 + $0x2f0] sm:$0xff]
    %v853 = vld [vmem:[#allocation6 + $0x2f8] sm:$0xff]
    %v854 = vld [vmem:[#allocation6 + $0x300] sm:$0xff]
    %v855 = vld [vmem:[#allocation6 + $0x308] sm:$0xff]
    %v856 = vld [vmem:[#allocation6 + $0x310] sm:$0xff]
    %v857 = vld [vmem:[#allocation6 + $0x318] sm:$0xff]
    %v858 = vld [vmem:[#allocation6 + $0x320] sm:$0xff]
    %v859 = vld [vmem:[#allocation6 + $0x328] sm:$0xff]
    %v860 = vld [vmem:[#allocation6 + $0x330] sm:$0xff]
    %v861 = vld [vmem:[#allocation6 + $0x338] sm:$0xff]
    %v862 = vld [vmem:[#allocation6 + $0x340] sm:$0xff]
    %v863 = vld [vmem:[#allocation6 + $0x348] sm:$0xff]
    %v864 = vld [vmem:[#allocation6 + $0x350] sm:$0xff]
    %v865 = vld [vmem:[#allocation6 + $0x358] sm:$0xff]
    %v866 = vld [vmem:[#allocation6 + $0x360] sm:$0xff]
    %v867 = vld [vmem:[#allocation6 + $0x368] sm:$0xff]
    %v868 = vld [vmem:[#allocation6 + $0x370] sm:$0xff]
    %v869 = vld [vmem:[#allocation6 + $0x378] sm:$0xff]
    %v870 = vld [vmem:[#allocation6 + $0x380] sm:$0xff]
    %v871 = vld [vmem:[#allocation6 + $0x388] sm:$0xff]
    %v872 = vld [vmem:[#allocation6 + $0x390] sm:$0xff]
    %v873 = vld [vmem:[#allocation6 + $0x398] sm:$0xff]
    %v874 = vld [vmem:[#allocation6 + $0x3a0] sm:$0xff]
    %v875 = vld [vmem:[#allocation6 + $0x3a8] sm:$0xff]
    %v876 = vld [vmem:[#allocation6 + $0x3b0] sm:$0xff]
    %v877 = vld [vmem:[#allocation6 + $0x3b8] sm:$0xff]
    %v878 = vld [vmem:[#allocation6 + $0x3c0] sm:$0xff]
    %v879 = vld [vmem:[#allocation6 + $0x3c8] sm:$0xff]
    %v880 = vld [vmem:[#allocation6 + $0x3d0] sm:$0xff]
    %v881 = vld [vmem:[#allocation6 + $0x3d8] sm:$0xff]
    %v882 = vld [vmem:[#allocation6 + $0x3e0] sm:$0xff]
    %v883 = vld [vmem:[#allocation6 + $0x3e8] sm:$0xff]
    %v884 = vld [vmem:[#allocation6 + $0x3f0] sm:$0xff]
    %v885 = vld [vmem:[#allocation6 + $0x3f8] sm:$0xff]
    %v886 = vld [vmem:[#allocation6 + $0x400] sm:$0xff]
    %v887 = vld [vmem:[#allocation6 + $0x408] sm:$0xff]
    %v888 = vld [vmem:[#allocation6 + $0x410] sm:$0xff]
    %v889 = vld [vmem:[#allocation6 + $0x418] sm:$0xff]
    %v890 = vld [vmem:[#allocation6 + $0x420] sm:$0xff]
    %v891 = vld [vmem:[#allocation6 + $0x428] sm:$0xff]
    %v892 = vld [vmem:[#allocation6 + $0x430] sm:$0xff]
    %v893 = vld [vmem:[#allocation6 + $0x438] sm:$0xff]
    %v894 = vld [vmem:[#allocation6 + $0x440] sm:$0xff]
    %v895 = vld [vmem:[#allocation6 + $0x448] sm:$0xff]
    %v896 = vld [vmem:[#allocation6 + $0x450] sm:$0xff]
    %v897 = vld [vmem:[#allocation6 + $0x458] sm:$0xff]
    %v898 = vld [vmem:[#allocation6 + $0x460] sm:$0xff]
    %v899 = vld [vmem:[#allocation6 + $0x468] sm:$0xff]
    %v900 = vld [vmem:[#allocation6 + $0x470] sm:$0xff]
    %v901 = vld [vmem:[#allocation6 + $0x478] sm:$0xff]
    %v902 = vld [vmem:[#allocation6 + $0x480] sm:$0xff]
    %v903 = vld [vmem:[#allocation6 + $0x488] sm:$0xff]
    %v904 = vld [vmem:[#allocation6 + $0x490] sm:$0xff]
    %v905 = vld [vmem:[#allocation6 + $0x498] sm:$0xff]
    %v906 = vld [vmem:[#allocation6 + $0x4a0] sm:$0xff]
    %v907 = vld [vmem:[#allocation6 + $0x4a8] sm:$0xff]
    %v908 = vld [vmem:[#allocation6 + $0x4b0] sm:$0xff]
    %v909 = vld [vmem:[#allocation6 + $0x4b8] sm:$0xff]
    %v910 = vld [vmem:[#allocation6 + $0x4c0] sm:$0xff]
    %v911 = vld [vmem:[#allocation6 + $0x4c8] sm:$0xff]
    %v912 = vld [vmem:[#allocation6 + $0x4d0] sm:$0xff]
    %v913 = vld [vmem:[#allocation6 + $0x4d8] sm:$0xff]
    %v914 = vld [vmem:[#allocation6 + $0x4e0] sm:$0xff]
    %v915 = vld [vmem:[#allocation6 + $0x4e8] sm:$0xff]
    %v916 = vld [vmem:[#allocation6 + $0x4f0] sm:$0xff]
    %v917 = vld [vmem:[#allocation6 + $0x4f8] sm:$0xff]
    %v918 = vld [vmem:[#allocation6 + $0x500] sm:$0xff]
    %v919 = vld [vmem:[#allocation6 + $0x508] sm:$0xff]
    %v920 = vld [vmem:[#allocation6 + $0x510] sm:$0xff]
    %v921 = vld [vmem:[#allocation6 + $0x518] sm:$0xff]
    %v922 = vld [vmem:[#allocation6 + $0x520] sm:$0xff]
    %v923 = vld [vmem:[#allocation6 + $0x528] sm:$0xff]
    %v924 = vld [vmem:[#allocation6 + $0x530] sm:$0xff]
    %v925 = vld [vmem:[#allocation6 + $0x538] sm:$0xff]
    %v926 = vld [vmem:[#allocation6 + $0x540] sm:$0xff]
    %v927 = vld [vmem:[#allocation6 + $0x548] sm:$0xff]
    %v928 = vld [vmem:[#allocation6 + $0x550] sm:$0xff]
    %v929 = vld [vmem:[#allocation6 + $0x558] sm:$0xff]
    %v930 = vld [vmem:[#allocation6 + $0x560] sm:$0xff]
    %v931 = vld [vmem:[#allocation6 + $0x568] sm:$0xff]
    %v932 = vld [vmem:[#allocation6 + $0x570] sm:$0xff]
    %v933 = vld [vmem:[#allocation6 + $0x578] sm:$0xff]
    %v934 = vld [vmem:[#allocation6 + $0x580] sm:$0xff]
    %v935 = vld [vmem:[#allocation6 + $0x588] sm:$0xff]
    %v936 = vld [vmem:[#allocation6 + $0x590] sm:$0xff]
    %v937 = vld [vmem:[#allocation6 + $0x598] sm:$0xff]
    %v938 = vld [vmem:[#allocation6 + $0x5a0] sm:$0xff]
    %v939 = vld [vmem:[#allocation6 + $0x5a8] sm:$0xff]
    %v940 = vld [vmem:[#allocation6 + $0x5b0] sm:$0xff]
    %v941 = vld [vmem:[#allocation6 + $0x5b8] sm:$0xff]
    %v942 = vld [vmem:[#allocation6 + $0x5c0] sm:$0xff]
    %v943 = vld [vmem:[#allocation6 + $0x5c8] sm:$0xff]
    %v944 = vld [vmem:[#allocation6 + $0x5d0] sm:$0xff]
    %v945 = vld [vmem:[#allocation6 + $0x5d8] sm:$0xff]
    %v946 = vld [vmem:[#allocation6 + $0x5e0] sm:$0xff]
    %v947 = vld [vmem:[#allocation6 + $0x5e8] sm:$0xff]
    %v948 = vld [vmem:[#allocation6 + $0x5f0] sm:$0xff]
    %v949 = vld [vmem:[#allocation6 + $0x5f8] sm:$0xff]
    %v950 = vld [vmem:[#allocation6 + $0x600] sm:$0xff]
    %v951 = vld [vmem:[#allocation6 + $0x608] sm:$0xff]
    %v952 = vld [vmem:[#allocation6 + $0x610] sm:$0xff]
    %v953 = vld [vmem:[#allocation6 + $0x618] sm:$0xff]
    %v954 = vld [vmem:[#allocation6 + $0x620] sm:$0xff]
    %v955 = vld [vmem:[#allocation6 + $0x628] sm:$0xff]
    %v956 = vld [vmem:[#allocation6 + $0x630] sm:$0xff]
    %v957 = vld [vmem:[#allocation6 + $0x638] sm:$0xff]
    %v958 = vld [vmem:[#allocation6 + $0x640] sm:$0xff]
    %v959 = vld [vmem:[#allocation6 + $0x648] sm:$0xff]
    %v960 = vld [vmem:[#allocation6 + $0x650] sm:$0xff]
    %v961 = vld [vmem:[#allocation6 + $0x658] sm:$0xff]
    %v962 = vld [vmem:[#allocation6 + $0x660] sm:$0xff]
    %v963 = vld [vmem:[#allocation6 + $0x668] sm:$0xff]
    %v964 = vld [vmem:[#allocation6 + $0x670] sm:$0xff]
    %v965 = vld [vmem:[#allocation6 + $0x678] sm:$0xff]
    %v966 = vld [vmem:[#allocation6 + $0x680] sm:$0xff]
    %v967 = vld [vmem:[#allocation6 + $0x688] sm:$0xff]
    %v968 = vld [vmem:[#allocation6 + $0x690] sm:$0xff]
    %v969 = vld [vmem:[#allocation6 + $0x698] sm:$0xff]
    %v970 = vld [vmem:[#allocation6 + $0x6a0] sm:$0xff]
    %v971 = vld [vmem:[#allocation6 + $0x6a8] sm:$0xff]
    %v972 = vld [vmem:[#allocation6 + $0x6b0] sm:$0xff]
    %v973 = vld [vmem:[#allocation6 + $0x6b8] sm:$0xff]
    %v974 = vld [vmem:[#allocation6 + $0x6c0] sm:$0xff]
    %v975 = vld [vmem:[#allocation6 + $0x6c8] sm:$0xff]
    %v976 = vld [vmem:[#allocation6 + $0x6d0] sm:$0xff]
    %v977 = vld [vmem:[#allocation6 + $0x6d8] sm:$0xff]
    %v978 = vld [vmem:[#allocation6 + $0x6e0] sm:$0xff]
    %v979 = vld [vmem:[#allocation6 + $0x6e8] sm:$0xff]
    %v980 = vld [vmem:[#allocation6 + $0x6f0] sm:$0xff]
    %v981 = vld [vmem:[#allocation6 + $0x6f8] sm:$0xff]
    %v982 = vld [vmem:[#allocation6 + $0x700] sm:$0xff]
    %v983 = vld [vmem:[#allocation6 + $0x708] sm:$0xff]
    %v984 = vld [vmem:[#allocation6 + $0x710] sm:$0xff]
    %v985 = vld [vmem:[#allocation6 + $0x718] sm:$0xff]
    %v986 = vld [vmem:[#allocation6 + $0x720] sm:$0xff]
    %v987 = vld [vmem:[#allocation6 + $0x728] sm:$0xff]
    %v988 = vld [vmem:[#allocation6 + $0x730] sm:$0xff]
    %v989 = vld [vmem:[#allocation6 + $0x738] sm:$0xff]
    %v990 = vld [vmem:[#allocation6 + $0x740] sm:$0xff]
    %v991 = vld [vmem:[#allocation6 + $0x748] sm:$0xff]
    %v992 = vld [vmem:[#allocation6 + $0x750] sm:$0xff]
    %v993 = vld [vmem:[#allocation6 + $0x758] sm:$0xff]
    %v994 = vld [vmem:[#allocation6 + $0x760] sm:$0xff]
    %v995 = vld [vmem:[#allocation6 + $0x768] sm:$0xff]
    %v996 = vld [vmem:[#allocation6 + $0x770] sm:$0xff]
    %v997 = vld [vmem:[#allocation6 + $0x778] sm:$0xff]
    %v998 = vld [vmem:[#allocation6 + $0x780] sm:$0xff]
    %v999 = vld [vmem:[#allocation6 + $0x788] sm:$0xff]
    %v1000 = vld [vmem:[#allocation6 + $0x790] sm:$0xff]
    %v1001 = vld [vmem:[#allocation6 + $0x798] sm:$0xff]
    %v1002 = vld [vmem:[#allocation6 + $0x7a0] sm:$0xff]
    %v1003 = vld [vmem:[#allocation6 + $0x7a8] sm:$0xff]
    %v1004 = vld [vmem:[#allocation6 + $0x7b0] sm:$0xff]
    %v1005 = vld [vmem:[#allocation6 + $0x7b8] sm:$0xff]
    %v1006 = vld [vmem:[#allocation6 + $0x7c0] sm:$0xff]
    %v1007 = vld [vmem:[#allocation6 + $0x7c8] sm:$0xff]
    %v1008 = vld [vmem:[#allocation6 + $0x7d0] sm:$0xff]
    %v1009 = vld [vmem:[#allocation6 + $0x7d8] sm:$0xff]
    %v1010 = vld [vmem:[#allocation6 + $0x7e0] sm:$0xff]
    %v1011 = vld [vmem:[#allocation6 + $0x7e8] sm:$0xff]
    %v1012 = vld [vmem:[#allocation6 + $0x7f0] sm:$0xff]
    %v1013 = vld [vmem:[#allocation6 + $0x7f8] sm:$0xff]
    %s1014 = scalar_lea.vmem [#allocation6], 2048
    %v1015 = vld [vmem:[%s1014] ss:$8 sm:$0xf]
    %v1016 = vld [vmem:[%s1014] ss:$8 sm:$0xf0]
    %v1017 = vor.u32 %v1015, %v1016
    %v1019 = vlaneseq
    %v1020 = vshrl.u32 %v1019, 7
    %v1021 = vsub.s32 0, %v1020
    %v1022 = vrot.slane %v1017, %v1021
    %v1023 = vlaneseq
    %v1024 = vshrl.u32 %v1023, 7
    %v1025 = vsub.s32 1, %v1024
    %v1026 = vrot.slane %v1017, %v1025
    %v1027 = vlaneseq
    %v1028 = vshrl.u32 %v1027, 7
    %v1029 = vsub.s32 2, %v1028
    %v1030 = vrot.slane %v1017, %v1029
    %v1031 = vlaneseq
    %v1032 = vshrl.u32 %v1031, 7
    %v1033 = vsub.s32 3, %v1032
    %v1034 = vrot.slane %v1017, %v1033
    %v1035 = vlaneseq
    %v1036 = vshrl.u32 %v1035, 7
    %v1037 = vsub.s32 4, %v1036
    %v1038 = vrot.slane %v1017, %v1037
    %v1039 = vlaneseq
    %v1040 = vshrl.u32 %v1039, 7
    %v1041 = vsub.s32 5, %v1040
    %v1042 = vrot.slane %v1017, %v1041
    %v1043 = vlaneseq
    %v1044 = vshrl.u32 %v1043, 7
    %v1045 = vsub.s32 6, %v1044
    %v1046 = vrot.slane %v1017, %v1045
    %v1047 = vlaneseq
    %v1048 = vshrl.u32 %v1047, 7
    %v1049 = vsub.s32 7, %v1048
    %v1050 = vrot.slane %v1017, %v1049
    %1059 = vmatprep.subr.mxu0 %v759
    %1060 = vmatpush1.msra.mxu0 %v758
    %1061 = vmatprep.subr.mxu0 %v767
    %1062 = vmatpush1.msra.mxu0 %v766
    %1063 = vmatprep.subr.mxu0 %v775
    %1064 = vmatpush1.msra.mxu0 %v774
    %1065 = vmatprep.subr.mxu0 %v783
    %1066 = vmatpush1.msra.mxu0 %v782
    %1067 = vmatprep.subr.mxu0 %v791
    %1068 = vmatpush1.msra.mxu0 %v790
    %1069 = vmatprep.subr.mxu0 %v799
    %1070 = vmatpush1.msra.mxu0 %v798
    %1071 = vmatprep.subr.mxu0 %v807
    %1072 = vmatpush1.msra.mxu0 %v806
    %1073 = vmatprep.subr.mxu0 %v815
    %1074 = vmatpush1.msra.mxu0 %v814
    %1075 = vmatprep.subr.mxu0 %v823
    %1076 = vmatpush1.msra.mxu0 %v822
    %1077 = vmatprep.subr.mxu0 %v831
    %1078 = vmatpush1.msra.mxu0 %v830
    %1079 = vmatprep.subr.mxu0 %v839
    %1080 = vmatpush1.msra.mxu0 %v838
    %1081 = vmatprep.subr.mxu0 %v847
    %1082 = vmatpush1.msra.mxu0 %v846
    %1083 = vmatprep.subr.mxu0 %v855
    %1084 = vmatpush1.msra.mxu0 %v854
    %1085 = vmatprep.subr.mxu0 %v863
    %1086 = vmatpush1.msra.mxu0 %v862
    %1087 = vmatprep.subr.mxu0 %v871
    %1088 = vmatpush1.msra.mxu0 %v870
    %1089 = vmatprep.subr.mxu0 %v879
    %1090 = vmatpush1.msra.mxu0 %v878
    %1091 = vmatprep.subr.mxu0 %v887
    %1092 = vmatpush1.msra.mxu0 %v886
    %1093 = vmatprep.subr.mxu0 %v895
    %1094 = vmatpush1.msra.mxu0 %v894
    %1095 = vmatprep.subr.mxu0 %v903
    %1096 = vmatpush1.msra.mxu0 %v902
    %1097 = vmatprep.subr.mxu0 %v911
    %1098 = vmatpush1.msra.mxu0 %v910
    %1099 = vmatprep.subr.mxu0 %v919
    %1100 = vmatpush1.msra.mxu0 %v918
    %1101 = vmatprep.subr.mxu0 %v927
    %1102 = vmatpush1.msra.mxu0 %v926
    %1103 = vmatprep.subr.mxu0 %v935
    %1104 = vmatpush1.msra.mxu0 %v934
    %1105 = vmatprep.subr.mxu0 %v943
    %1106 = vmatpush1.msra.mxu0 %v942
    %1107 = vmatprep.subr.mxu0 %v951
    %1108 = vmatpush1.msra.mxu0 %v950
    %1109 = vmatprep.subr.mxu0 %v959
    %1110 = vmatpush1.msra.mxu0 %v958
    %1111 = vmatprep.subr.mxu0 %v967
    %1112 = vmatpush1.msra.mxu0 %v966
    %1113 = vmatprep.subr.mxu0 %v975
    %1114 = vmatpush1.msra.mxu0 %v974
    %1115 = vmatprep.subr.mxu0 %v983
    %1116 = vmatpush1.msra.mxu0 %v982
    %1117 = vmatprep.subr.mxu0 %v991
    %1118 = vmatpush1.msra.mxu0 %v990
    %1119 = vmatprep.subr.mxu0 %v999
    %1120 = vmatpush1.msra.mxu0 %v998
    %1121 = vmatprep.subr.mxu0 %v1007
    %1122 = vmatpush1.msra.mxu0 %v1006
    %1123 = vmatprep.mubr.f32.mxu0 %v757
    %1124 = vmatmul.mubr.f32.gmra.mrb[0].mxu0 %v756
    %v1125 = vpop.f32.mrb[0].mxu0
    %v1126 = vadd.f32 %v1022, %v1125
    %v1127 = vpop.f32.mrb[0].mxu0
    %v1128 = vadd.f32 %v1026, %v1127
    %1129 = vdwg.mxu0
    %1130 = vmatprep.subr.mxu0 %v761
    %1131 = vmatpush1.msra.mxu0 %v760
    %1132 = vmatprep.subr.mxu0 %v769
    %1133 = vmatpush1.msra.mxu0 %v768
    %1134 = vmatprep.subr.mxu0 %v777
    %1135 = vmatpush1.msra.mxu0 %v776
    %1136 = vmatprep.subr.mxu0 %v785
    %1137 = vmatpush1.msra.mxu0 %v784
    %1138 = vmatprep.subr.mxu0 %v793
    %1139 = vmatpush1.msra.mxu0 %v792
    %1140 = vmatprep.subr.mxu0 %v801
    %1141 = vmatpush1.msra.mxu0 %v800
    %1142 = vmatprep.subr.mxu0 %v809
    %1143 = vmatpush1.msra.mxu0 %v808
    %1144 = vmatprep.subr.mxu0 %v817
    %1145 = vmatpush1.msra.mxu0 %v816
    %1146 = vmatprep.subr.mxu0 %v825
    %1147 = vmatpush1.msra.mxu0 %v824
    %1148 = vmatprep.subr.mxu0 %v833
    %1149 = vmatpush1.msra.mxu0 %v832
    %1150 = vmatprep.subr.mxu0 %v841
    %1151 = vmatpush1.msra.mxu0 %v840
    %1152 = vmatprep.subr.mxu0 %v849
    %1153 = vmatpush1.msra.mxu0 %v848
    %1154 = vmatprep.subr.mxu0 %v857
    %1155 = vmatpush1.msra.mxu0 %v856
    %1156 = vmatprep.subr.mxu0 %v865
    %1157 = vmatpush1.msra.mxu0 %v864
    %1158 = vmatprep.subr.mxu0 %v873
    %1159 = vmatpush1.msra.mxu0 %v872
    %1160 = vmatprep.subr.mxu0 %v881
    %1161 = vmatpush1.msra.mxu0 %v880
    %1162 = vmatprep.subr.mxu0 %v889
    %1163 = vmatpush1.msra.mxu0 %v888
    %1164 = vmatprep.subr.mxu0 %v897
    %1165 = vmatpush1.msra.mxu0 %v896
    %1166 = vmatprep.subr.mxu0 %v905
    %1167 = vmatpush1.msra.mxu0 %v904
    %1168 = vmatprep.subr.mxu0 %v913
    %1169 = vmatpush1.msra.mxu0 %v912
    %1170 = vmatprep.subr.mxu0 %v921
    %1171 = vmatpush1.msra.mxu0 %v920
    %1172 = vmatprep.subr.mxu0 %v929
    %1173 = vmatpush1.msra.mxu0 %v928
    %1174 = vmatprep.subr.mxu0 %v937
    %1175 = vmatpush1.msra.mxu0 %v936
    %1176 = vmatprep.subr.mxu0 %v945
    %1177 = vmatpush1.msra.mxu0 %v944
    %1178 = vmatprep.subr.mxu0 %v953
    %1179 = vmatpush1.msra.mxu0 %v952
    %1180 = vmatprep.subr.mxu0 %v961
    %1181 = vmatpush1.msra.mxu0 %v960
    %1182 = vmatprep.subr.mxu0 %v969
    %1183 = vmatpush1.msra.mxu0 %v968
    %1184 = vmatprep.subr.mxu0 %v977
    %1185 = vmatpush1.msra.mxu0 %v976
    %1186 = vmatprep.subr.mxu0 %v985
    %1187 = vmatpush1.msra.mxu0 %v984
    %1188 = vmatprep.subr.mxu0 %v993
    %1189 = vmatpush1.msra.mxu0 %v992
    %1190 = vmatprep.subr.mxu0 %v1001
    %1191 = vmatpush1.msra.mxu0 %v1000
    %1192 = vmatprep.subr.mxu0 %v1009
    %1193 = vmatpush1.msra.mxu0 %v1008
    %1194 = vmatprep.mubr.f32.mxu0 %v757
    %1195 = vmatmul.mubr.f32.gmra.mrb[0].mxu0 %v756
    %v1196 = vpop.f32.mrb[0].mxu0
    %v1197 = vadd.f32 %v1030, %v1196
    %v1198 = vpop.f32.mrb[0].mxu0
    %v1199 = vadd.f32 %v1034, %v1198
    %1200 = vdwg.mxu0
    %1201 = vmatprep.subr.mxu0 %v763
    %1202 = vmatpush1.msra.mxu0 %v762
    %1203 = vmatprep.subr.mxu0 %v771
    %1204 = vmatpush1.msra.mxu0 %v770
    %1205 = vmatprep.subr.mxu0 %v779
    %1206 = vmatpush1.msra.mxu0 %v778
    %1207 = vmatprep.subr.mxu0 %v787
    %1208 = vmatpush1.msra.mxu0 %v786
    %1209 = vmatprep.subr.mxu0 %v795
    %1210 = vmatpush1.msra.mxu0 %v794
    %1211 = vmatprep.subr.mxu0 %v803
    %1212 = vmatpush1.msra.mxu0 %v802
    %1213 = vmatprep.subr.mxu0 %v811
    %1214 = vmatpush1.msra.mxu0 %v810
    %1215 = vmatprep.subr.mxu0 %v819
    %1216 = vmatpush1.msra.mxu0 %v818
    %1217 = vmatprep.subr.mxu0 %v827
    %1218 = vmatpush1.msra.mxu0 %v826
    %1219 = vmatprep.subr.mxu0 %v835
    %1220 = vmatpush1.msra.mxu0 %v834
    %1221 = vmatprep.subr.mxu0 %v843
    %1222 = vmatpush1.msra.mxu0 %v842
    %1223 = vmatprep.subr.mxu0 %v851
    %1224 = vmatpush1.msra.mxu0 %v850
    %1225 = vmatprep.subr.mxu0 %v859
    %1226 = vmatpush1.msra.mxu0 %v858
    %1227 = vmatprep.subr.mxu0 %v867
    %1228 = vmatpush1.msra.mxu0 %v866
    %1229 = vmatprep.subr.mxu0 %v875
    %1230 = vmatpush1.msra.mxu0 %v874
    %1231 = vmatprep.subr.mxu0 %v883
    %1232 = vmatpush1.msra.mxu0 %v882
    %1233 = vmatprep.subr.mxu0 %v891
    %1234 = vmatpush1.msra.mxu0 %v890
    %1235 = vmatprep.subr.mxu0 %v899
    %1236 = vmatpush1.msra.mxu0 %v898
    %1237 = vmatprep.subr.mxu0 %v907
    %1238 = vmatpush1.msra.mxu0 %v906
    %1239 = vmatprep.subr.mxu0 %v915
    %1240 = vmatpush1.msra.mxu0 %v914
    %1241 = vmatprep.subr.mxu0 %v923
    %1242 = vmatpush1.msra.mxu0 %v922
    %1243 = vmatprep.subr.mxu0 %v931
    %1244 = vmatpush1.msra.mxu0 %v930
    %1245 = vmatprep.subr.mxu0 %v939
    %1246 = vmatpush1.msra.mxu0 %v938
    %1247 = vmatprep.subr.mxu0 %v947
    %1248 = vmatpush1.msra.mxu0 %v946
    %1249 = vmatprep.subr.mxu0 %v955
    %1250 = vmatpush1.msra.mxu0 %v954
    %1251 = vmatprep.subr.mxu0 %v963
    %1252 = vmatpush1.msra.mxu0 %v962
    %1253 = vmatprep.subr.mxu0 %v971
    %1254 = vmatpush1.msra.mxu0 %v970
    %1255 = vmatprep.subr.mxu0 %v979
    %1256 = vmatpush1.msra.mxu0 %v978
    %1257 = vmatprep.subr.mxu0 %v987
    %1258 = vmatpush1.msra.mxu0 %v986
    %1259 = vmatprep.subr.mxu0 %v995
    %1260 = vmatpush1.msra.mxu0 %v994
    %1261 = vmatprep.subr.mxu0 %v1003
    %1262 = vmatpush1.msra.mxu0 %v1002
    %1263 = vmatprep.subr.mxu0 %v1011
    %1264 = vmatpush1.msra.mxu0 %v1010
    %1265 = vmatprep.mubr.f32.mxu0 %v757
    %1266 = vmatmul.mubr.f32.gmra.mrb[0].mxu0 %v756
    %v1267 = vpop.f32.mrb[0].mxu0
    %v1268 = vadd.f32 %v1038, %v1267
    %v1269 = vpop.f32.mrb[0].mxu0
    %v1270 = vadd.f32 %v1042, %v1269
    %1271 = vdwg.mxu0
    %1272 = vmatprep.subr.mxu0 %v765
    %1273 = vmatpush1.msra.mxu0 %v764
    %1274 = vmatprep.subr.mxu0 %v773
    %1275 = vmatpush1.msra.mxu0 %v772
    %1276 = vmatprep.subr.mxu0 %v781
    %1277 = vmatpush1.msra.mxu0 %v780
    %1278 = vmatprep.subr.mxu0 %v789
    %1279 = vmatpush1.msra.mxu0 %v788
    %1280 = vmatprep.subr.mxu0 %v797
    %1281 = vmatpush1.msra.mxu0 %v796
    %1282 = vmatprep.subr.mxu0 %v805
    %1283 = vmatpush1.msra.mxu0 %v804
    %1284 = vmatprep.subr.mxu0 %v813
    %1285 = vmatpush1.msra.mxu0 %v812
    %1286 = vmatprep.subr.mxu0 %v821
    %1287 = vmatpush1.msra.mxu0 %v820
    %1288 = vmatprep.subr.mxu0 %v829
    %1289 = vmatpush1.msra.mxu0 %v828
    %1290 = vmatprep.subr.mxu0 %v837
    %1291 = vmatpush1.msra.mxu0 %v836
    %1292 = vmatprep.subr.mxu0 %v845
    %1293 = vmatpush1.msra.mxu0 %v844
    %1294 = vmatprep.subr.mxu0 %v853
    %1295 = vmatpush1.msra.mxu0 %v852
    %1296 = vmatprep.subr.mxu0 %v861
    %1297 = vmatpush1.msra.mxu0 %v860
    %1298 = vmatprep.subr.mxu0 %v869
    %1299 = vmatpush1.msra.mxu0 %v868
    %1300 = vmatprep.subr.mxu0 %v877
    %1301 = vmatpush1.msra.mxu0 %v876
    %1302 = vmatprep.subr.mxu0 %v885
    %1303 = vmatpush1.msra.mxu0 %v884
    %1304 = vmatprep.subr.mxu0 %v893
    %1305 = vmatpush1.msra.mxu0 %v892
    %1306 = vmatprep.subr.mxu0 %v901
    %1307 = vmatpush1.msra.mxu0 %v900
    %1308 = vmatprep.subr.mxu0 %v909
    %1309 = vmatpush1.msra.mxu0 %v908
    %1310 = vmatprep.subr.mxu0 %v917
    %1311 = vmatpush1.msra.mxu0 %v916
    %1312 = vmatprep.subr.mxu0 %v925
    %1313 = vmatpush1.msra.mxu0 %v924
    %1314 = vmatprep.subr.mxu0 %v933
    %1315 = vmatpush1.msra.mxu0 %v932
    %1316 = vmatprep.subr.mxu0 %v941
    %1317 = vmatpush1.msra.mxu0 %v940
    %1318 = vmatprep.subr.mxu0 %v949
    %1319 = vmatpush1.msra.mxu0 %v948
    %1320 = vmatprep.subr.mxu0 %v957
    %1321 = vmatpush1.msra.mxu0 %v956
    %1322 = vmatprep.subr.mxu0 %v965
    %1323 = vmatpush1.msra.mxu0 %v964
    %1324 = vmatprep.subr.mxu0 %v973
    %1325 = vmatpush1.msra.mxu0 %v972
    %1326 = vmatprep.subr.mxu0 %v981
    %1327 = vmatpush1.msra.mxu0 %v980
    %1328 = vmatprep.subr.mxu0 %v989
    %1329 = vmatpush1.msra.mxu0 %v988
    %1330 = vmatprep.subr.mxu0 %v997
    %1331 = vmatpush1.msra.mxu0 %v996
    %1332 = vmatprep.subr.mxu0 %v1005
    %1333 = vmatpush1.msra.mxu0 %v1004
    %1334 = vmatprep.subr.mxu0 %v1013
    %1335 = vmatpush1.msra.mxu0 %v1012
    %1336 = vmatprep.mubr.f32.mxu0 %v757
    %1337 = vmatmul.mubr.f32.gmra.mrb[0].mxu0 %v756
    %v1338 = vpop.f32.mrb[0].mxu0
    %v1339 = vadd.f32 %v1046, %v1338
    %v1340 = vpop.f32.mrb[0].mxu0
    %v1341 = vadd.f32 %v1050, %v1340
    %1342 = vdwg.mxu0
    %v1351 = vcombine.low %v1126, %v1128
    %v1352 = vcombine.low %v1197, %v1199
    %v1354 = vunpack.c.l.s4 1983009808
    %v1355 = vunpack.c.0.s8 %v1354
    %v1356 = vlaneseq
    %v1357 = vshrl.u32 %v1356, 7
    %v1358 = vsub.s32 %v1355, %v1357
    %v1359 = vrot.slane %v1351, %v1358
    %v1361 = vunpack.c.l.s4 1983009808
    %v1362 = vunpack.c.0.s8 %v1361
    %v1363 = vlaneseq
    %v1364 = vshrl.u32 %v1363, 7
    %v1365 = vsub.s32 %v1362, %v1364
    %v1366 = vrot.slane %v1352, %v1365
    %v1367 = vcombine.low %v1359, %v1366
    %v1368 = vcombine.low %v1268, %v1270
    %v1369 = vcombine.low %v1339, %v1341
    %v1371 = vunpack.c.l.s4 1983009808
    %v1372 = vunpack.c.0.s8 %v1371
    %v1373 = vlaneseq
    %v1374 = vshrl.u32 %v1373, 7
    %v1375 = vsub.s32 %v1372, %v1374
    %v1376 = vrot.slane %v1368, %v1375
    %v1378 = vunpack.c.l.s4 1983009808
    %v1379 = vunpack.c.0.s8 %v1378
    %v1380 = vlaneseq
    %v1381 = vshrl.u32 %v1380, 7
    %v1382 = vsub.s32 %v1379, %v1381
    %v1383 = vrot.slane %v1369, %v1382
    %v1384 = vcombine.low %v1376, %v1383
    %1387 = vst [vmem:[%s3] sm:$0xff] %v1367
    %1388 = vst [vmem:[%s3 + $0x8] sm:$0xff] %v1384
    // Predicated region
    $region26: #{netg_cnn_forward.1} parent=1 // pred_check
      _
    $region27: #{netg_cnn_forward.1} parent=1 // pred_check_branch
      %1390 = sbr.rel (0) target = $region29
    $region28: #{netg_cnn_forward.1} parent=1 // pred_region
      _
    $region29: #{netg_cnn_forward.1} parent=1 // pred_fallthru
      _
    // Predicated region
    $region30: #{netg_cnn_forward.1} parent=1 // pred_check
      _
    $region31: #{netg_cnn_forward.1} parent=1 // pred_check_branch
      %1392 = sbr.rel (0) target = $region33
    $region32: #{netg_cnn_forward.1} parent=1 // pred_region
      _
    $region33: #{netg_cnn_forward.1} parent=1 // pred_fallthru
      _
    %1393 = vsyncpa [#allocation3], 1
    %1394 = vsyncpa [#allocation5], 1

</llo_original>
